<compile_context>
chip_gen: v6e
topology: v6e:2x2x1
jax: 0.10.0
libtpu: 0.0.40
codegen_flags: <defaults>
</compile_context>

<pallas_src>
import jax
import jax.numpy as jnp
from jax.experimental import pallas as pl
from jax.experimental.pallas import tpu as pltpu

K_MAX = 7            # largest branch kernel (7x7)
PAD = K_MAX // 2     # = 3, shared padding for the embedded-7x7 footprint
KK = K_MAX * K_MAX   # 49 taps


def _round_up(x, m):
    return (x + m - 1) // m * m


def _make_kernel(Cin, Cin_pad, Cout, H, W, TC):
    Wp = W + 2 * PAD
    HWp = H * Wp                              # width of the wide output grid
    L = (K_MAX - 1) * Wp + HWp + 2 * PAD      # flat padded image + tap overhang

    def kernel(x_ref, wall_ref, w1_ref, out_ref, xf_ref, pT_ref):
        # x_ref:    (1, Cin, H*W)        f32  lane-dense NCHW input for 1 image
        # wall_ref: (3*Cout, KK*Cin_pad) bf16 all 3 branch weights, 7x7-embedded
        # w1_ref:   (Cout, 3*Cout)       bf16 1x1 conv weight (transposed)
        # out_ref:  (1, Cout, H*Wp)      f32  wide output (wrapper drops pad cols)
        # xf_ref:   (Cin_pad, L)         f32  scratch: flat zero-padded image
        # pT_ref:   (KK*Cin_pad, H*Wp)   bf16 scratch: im2col patches (transposed)
        f32 = jnp.float32
        bf16 = jnp.bfloat16

        # ---- zero ONLY the padding regions of xf (interior overwritten below).
        if Cin_pad > Cin:
            # zero the padded channel rows wholesale (their weight cols are 0,
            # but keep VMEM garbage/NaN out of the matmul operands).
            xf_ref[Cin:Cin_pad, :] = jnp.zeros((Cin_pad - Cin, L), f32)
        head = PAD * Wp + PAD                       # top pad rows + left pad of row 0
        xf_ref[:, 0:head] = jnp.zeros((Cin_pad, head), f32)
        tail = (PAD + H - 1) * Wp + PAD + W         # right pad of last row .. end
        xf_ref[:, tail:L] = jnp.zeros((Cin_pad, L - tail), f32)
        gap = Wp - W                                # right pad of row h + left pad of row h+1
        for h in range(H - 1):
            g0 = (PAD + h) * Wp + PAD + W
            xf_ref[:, g0:g0 + gap] = jnp.zeros((Cin_pad, gap), f32)

        # ---- copy the lane-dense input rows into the flat padded image.
        for h in range(H):
            dst = (PAD + h) * Wp + PAD
            xf_ref[0:Cin, dst:dst + W] = x_ref[0, :, h * W:(h + 1) * W].astype(f32)

        # ---- im2col: 7 band loads; the 7 kw-shifts per band are in-register
        #      lane slices; the 49 pT stores are sublane-aligned (Cin_pad rows).
        #      Row (kh*7+kw)*Cin_pad + c of pT holds xpad[c, h+kh, w+kw] at
        #      column q = h*Wp + w  (columns with w >= W are don't-care).
        for kh in range(K_MAX):
            band = xf_ref[:, kh * Wp: kh * Wp + HWp + 2 * PAD].astype(bf16)
            for kw in range(K_MAX):
                r0 = (kh * K_MAX + kw) * Cin_pad
                pT_ref[r0:r0 + Cin_pad, :] = band[:, kw:kw + HWp]

        # ---- fused matmuls, column-chunked (never materialize full y).
        wall = wall_ref[...]          # bf16 (3*Cout, KK*Cin_pad)
        w1 = w1_ref[...]              # bf16 (Cout, 3*Cout)
        for c0 in range(0, HWp, TC):
            cw = min(TC, HWp - c0)
            p = pT_ref[:, c0:c0 + cw]                                   # bf16
            # all three conv branches + per-branch ReLU: ONE MXU matmul.
            y = jnp.maximum(
                jnp.dot(wall, p, preferred_element_type=f32), 0.0)      # (3*Cout, cw)
            # fused (virtual) channel-concat + 1x1 conv + ReLU.
            o = jnp.maximum(
                jnp.dot(w1, y.astype(bf16), preferred_element_type=f32), 0.0)
            out_ref[0, :, c0:c0 + cw] = o.astype(out_ref.dtype)

    return kernel


@jax.jit
def multi_scale_conv(x_nchw, w3, w5, w7, w1):
    """x_nchw: (N, Cin, H, W) f32.  w3/w5/w7: HWIO (K,K,Cin,Cout).  w1: (3*Cout, Cout).

    NOTE: PyTorch's 1x1 Conv2d weight is (Cout, 3*Cout, 1, 1); a real checkpoint
    needs a transpose/squeeze to this (3*Cout, Cout) layout.
    """
    N, Cin, H, W = x_nchw.shape
    Cout = w3.shape[-1]
    Wp = W + 2 * PAD
    HWp = H * Wp
    Cin_pad = _round_up(Cin, 8)
    L = (K_MAX - 1) * Wp + HWp + 2 * PAD
    TC = 512  # column chunk (multiple of 128) for the fused matmuls

    # Weight prep (tiny, hoisted by XLA): zero-embed 3x3/5x5 into the centered
    # 7x7 footprint, pad Cin -> Cin_pad with zero channels, flatten each branch
    # to (49*Cin_pad, Cout), stack branches on the columns, cast to bf16.
    def embed(w, k):
        p = (K_MAX - k) // 2
        w = jnp.pad(w, ((p, p), (p, p), (0, Cin_pad - Cin), (0, 0)))
        return w.reshape(KK * Cin_pad, Cout)

    wall_t = jnp.concatenate([embed(w3, 3), embed(w5, 5), embed(w7, 7)],
                             axis=-1).T.astype(jnp.bfloat16)   # (3*Cout, 49*Cin_pad)
    w1_t = w1.T.astype(jnp.bfloat16)                           # (Cout, 3*Cout)

    x_flat = x_nchw.reshape(N, Cin, H * W)   # metadata-only for contiguous NCHW

    kernel = _make_kernel(Cin, Cin_pad, Cout, H, W, TC)

    # Explicit VMEM budget from the actual scratch + (double-buffered) I/O sizes.
    scratch_bytes = Cin_pad * L * 4 + KK * Cin_pad * HWp * 2
    io_bytes = 2 * (Cin * H * W * 4 + Cout * HWp * 4
                    + 3 * Cout * KK * Cin_pad * 2 + Cout * 3 * Cout * 2)
    vmem_limit = int(min(max(2 * (scratch_bytes + io_bytes), 32 << 20), 64 << 20))

    out_wide = pl.pallas_call(
        kernel,
        out_shape=jax.ShapeDtypeStruct((N, Cout, HWp), x_nchw.dtype),
        grid=(N,),
        in_specs=[
            pl.BlockSpec((1, Cin, H * W), lambda n: (n, 0, 0)),
            pl.BlockSpec((3 * Cout, KK * Cin_pad), lambda n: (0, 0)),
            pl.BlockSpec((Cout, 3 * Cout), lambda n: (0, 0)),
        ],
        out_specs=pl.BlockSpec((1, Cout, HWp), lambda n: (n, 0, 0)),
        scratch_shapes=[
            pltpu.VMEM((Cin_pad, L), jnp.float32),          # flat padded image
            pltpu.VMEM((KK * Cin_pad, HWp), jnp.bfloat16),  # im2col patch matrix
        ],
        compiler_params=pltpu.CompilerParams(
            dimension_semantics=("parallel",),
            vmem_limit_bytes=vmem_limit),
    )(x_flat, wall_t, w1_t)

    # Drop the (Wp - W) don't-care columns per row (one fused XLA slice) and
    # view back as NCHW.
    return out_wide.reshape(N, Cout, H, Wp)[:, :, :, :W]


def reference(x_nchw, w3, w5, w7, w1):
    """Plain-JAX (f32) reference matching the PyTorch forward."""
    x = jnp.transpose(x_nchw, (0, 2, 3, 1))

    def conv(x, w, pad):
        return jax.lax.conv_general_dilated(
            x, w, window_strides=(1, 1), padding=[(pad, pad), (pad, pad)],
            dimension_numbers=("NHWC", "HWIO", "NHWC"))

    y3 = jax.nn.relu(conv(x, w3, 1))
    y5 = jax.nn.relu(conv(x, w5, 2))
    y7 = jax.nn.relu(conv(x, w7, 3))
    comb = jnp.concatenate([y3, y5, y7], axis=-1)
    out = jax.nn.relu(jnp.einsum("nhwi,io->nhwo", comb, w1))
    return jnp.transpose(out, (0, 3, 1, 2))


if __name__ == "__main__":
    N, Cin, Cout, H, W = 2, 4, 8, 16, 16

    key = jax.random.PRNGKey(0)
    kx, k3, k5, k7, k1 = jax.random.split(key, 5)

    x = jax.random.normal(kx, (N, Cin, H, W), dtype=jnp.float32)
    # Deterministic synthetic parameters (no bias, per the module).
    w3 = jax.random.normal(k3, (3, 3, Cin, Cout), dtype=jnp.float32) * 0.1
    w5 = jax.random.normal(k5, (5, 5, Cin, Cout), dtype=jnp.float32) * 0.1
    w7 = jax.random.normal(k7, (7, 7, Cin, Cout), dtype=jnp.float32) * 0.1
    w1 = jax.random.normal(k1, (3 * Cout, Cout), dtype=jnp.float32) * 0.1

    out = multi_scale_conv(x, w3, w5, w7, w1)
    out = jax.block_until_ready(out)

    ref = reference(x, w3, w5, w7, w1)
    assert out.shape == (N, Cout, H, W), out.shape
    assert bool(jnp.all(jnp.isfinite(out))), "non-finite output"
    # bf16 matmul inputs with f32 accumulation: loosened tolerance vs f32 ref.
    err = float(jnp.max(jnp.abs(out - ref)))
    scale = float(jnp.max(jnp.abs(ref)))
    assert err <= 5e-2 * scale + 5e-2, (err, scale)

    print("KERNEL_OK")
</pallas_src>

<mosaic_0001>
module attributes {stable_mosaic.version = 11 : i64} {
  func.func @kernel(%arg0: i32, %arg1: memref<1x4x256xf32, #tpu.memory_space<vmem>>, %arg2: memref<24x392xbf16, #tpu.memory_space<vmem>>, %arg3: memref<8x24xbf16, #tpu.memory_space<vmem>>, %arg4: memref<1x8x352xf32, #tpu.memory_space<vmem>>, %arg5: memref<8x490xf32, #tpu.memory_space<vmem>>, %arg6: memref<392x352xbf16, #tpu.memory_space<vmem>>) attributes {dimension_semantics = [#tpu.dimension_semantics<parallel>], iteration_bounds = array<i64: 2>, scalar_prefetch = 0 : i64, scratch_operands = 2 : i64, tpu.core_type = #tpu.core_type<tc>, window_params = [{transform_indices = @transform_0, window_bounds = array<i64: 1, 4, 256>}, {pipeline_mode = #tpu.pipeline_mode<synchronous>, transform_indices = @transform_1, window_bounds = array<i64: 24, 392>}, {pipeline_mode = #tpu.pipeline_mode<synchronous>, transform_indices = @transform_2, window_bounds = array<i64: 8, 24>}, {transform_indices = @transform_3, window_bounds = array<i64: 1, 8, 352>}]} {
    %cst = arith.constant 0.000000e+00 : f32
    %0 = vector.broadcast %cst : f32 to vector<4x490xf32>
    %c4 = arith.constant 4 : index
    %c0 = arith.constant 0 : index
    %1 = vector.load %arg5[%c4, %c0] : memref<8x490xf32, #tpu.memory_space<vmem>>, vector<4x490xf32>
    tpu.vector_store %arg5[%c4, %c0], %0 {strides = array<i32>} : memref<8x490xf32, #tpu.memory_space<vmem>>, vector<4x490xf32>,
    %cst_0 = arith.constant 0.000000e+00 : f32
    %2 = vector.broadcast %cst_0 : f32 to vector<8x69xf32>
    %c0_1 = arith.constant 0 : index
    %c0_2 = arith.constant 0 : index
    %3 = vector.load %arg5[%c0_1, %c0_2] : memref<8x490xf32, #tpu.memory_space<vmem>>, vector<8x69xf32>
    tpu.vector_store %arg5[%c0_1, %c0_2], %2 {strides = array<i32>} : memref<8x490xf32, #tpu.memory_space<vmem>>, vector<8x69xf32>,
    %cst_3 = arith.constant 0.000000e+00 : f32
    %4 = vector.broadcast %cst_3 : f32 to vector<8x75xf32>
    %c0_4 = arith.constant 0 : index
    %c415 = arith.constant 415 : index
    %5 = vector.load %arg5[%c0_4, %c415] : memref<8x490xf32, #tpu.memory_space<vmem>>, vector<8x75xf32>
    tpu.vector_store %arg5[%c0_4, %c415], %4 {strides = array<i32>} : memref<8x490xf32, #tpu.memory_space<vmem>>, vector<8x75xf32>,
    %cst_5 = arith.constant 0.000000e+00 : f32
    %6 = vector.broadcast %cst_5 : f32 to vector<8x6xf32>
    %c0_6 = arith.constant 0 : index
    %c85 = arith.constant 85 : index
    %7 = vector.load %arg5[%c0_6, %c85] : memref<8x490xf32, #tpu.memory_space<vmem>>, vector<8x6xf32>
    tpu.vector_store %arg5[%c0_6, %c85], %6 {strides = array<i32>} : memref<8x490xf32, #tpu.memory_space<vmem>>, vector<8x6xf32>,
    %cst_7 = arith.constant 0.000000e+00 : f32
    %8 = vector.broadcast %cst_7 : f32 to vector<8x6xf32>
    %c0_8 = arith.constant 0 : index
    %c107 = arith.constant 107 : index
    %9 = vector.load %arg5[%c0_8, %c107] : memref<8x490xf32, #tpu.memory_space<vmem>>, vector<8x6xf32>
    tpu.vector_store %arg5[%c0_8, %c107], %8 {strides = array<i32>} : memref<8x490xf32, #tpu.memory_space<vmem>>, vector<8x6xf32>,
    %cst_9 = arith.constant 0.000000e+00 : f32
    %10 = vector.broadcast %cst_9 : f32 to vector<8x6xf32>
    %c0_10 = arith.constant 0 : index
    %c129 = arith.constant 129 : index
    %11 = vector.load %arg5[%c0_10, %c129] : memref<8x490xf32, #tpu.memory_space<vmem>>, vector<8x6xf32>
    tpu.vector_store %arg5[%c0_10, %c129], %10 {strides = array<i32>} : memref<8x490xf32, #tpu.memory_space<vmem>>, vector<8x6xf32>,
    %cst_11 = arith.constant 0.000000e+00 : f32
    %12 = vector.broadcast %cst_11 : f32 to vector<8x6xf32>
    %c0_12 = arith.constant 0 : index
    %c151 = arith.constant 151 : index
    %13 = vector.load %arg5[%c0_12, %c151] : memref<8x490xf32, #tpu.memory_space<vmem>>, vector<8x6xf32>
    tpu.vector_store %arg5[%c0_12, %c151], %12 {strides = array<i32>} : memref<8x490xf32, #tpu.memory_space<vmem>>, vector<8x6xf32>,
    %cst_13 = arith.constant 0.000000e+00 : f32
    %14 = vector.broadcast %cst_13 : f32 to vector<8x6xf32>
    %c0_14 = arith.constant 0 : index
    %c173 = arith.constant 173 : index
    %15 = vector.load %arg5[%c0_14, %c173] : memref<8x490xf32, #tpu.memory_space<vmem>>, vector<8x6xf32>
    tpu.vector_store %arg5[%c0_14, %c173], %14 {strides = array<i32>} : memref<8x490xf32, #tpu.memory_space<vmem>>, vector<8x6xf32>,
    %cst_15 = arith.constant 0.000000e+00 : f32
    %16 = vector.broadcast %cst_15 : f32 to vector<8x6xf32>
    %c0_16 = arith.constant 0 : index
    %c195 = arith.constant 195 : index
    %17 = vector.load %arg5[%c0_16, %c195] : memref<8x490xf32, #tpu.memory_space<vmem>>, vector<8x6xf32>
    tpu.vector_store %arg5[%c0_16, %c195], %16 {strides = array<i32>} : memref<8x490xf32, #tpu.memory_space<vmem>>, vector<8x6xf32>,
    %cst_17 = arith.constant 0.000000e+00 : f32
    %18 = vector.broadcast %cst_17 : f32 to vector<8x6xf32>
    %c0_18 = arith.constant 0 : index
    %c217 = arith.constant 217 : index
    %19 = vector.load %arg5[%c0_18, %c217] : memref<8x490xf32, #tpu.memory_space<vmem>>, vector<8x6xf32>
    tpu.vector_store %arg5[%c0_18, %c217], %18 {strides = array<i32>} : memref<8x490xf32, #tpu.memory_space<vmem>>, vector<8x6xf32>,
    %cst_19 = arith.constant 0.000000e+00 : f32
    %20 = vector.broadcast %cst_19 : f32 to vector<8x6xf32>
    %c0_20 = arith.constant 0 : index
    %c239 = arith.constant 239 : index
    %21 = vector.load %arg5[%c0_20, %c239] : memref<8x490xf32, #tpu.memory_space<vmem>>, vector<8x6xf32>
    tpu.vector_store %arg5[%c0_20, %c239], %20 {strides = array<i32>} : memref<8x490xf32, #tpu.memory_space<vmem>>, vector<8x6xf32>,
    %cst_21 = arith.constant 0.000000e+00 : f32
    %22 = vector.broadcast %cst_21 : f32 to vector<8x6xf32>
    %c0_22 = arith.constant 0 : index
    %c261 = arith.constant 261 : index
    %23 = vector.load %arg5[%c0_22, %c261] : memref<8x490xf32, #tpu.memory_space<vmem>>, vector<8x6xf32>
    tpu.vector_store %arg5[%c0_22, %c261], %22 {strides = array<i32>} : memref<8x490xf32, #tpu.memory_space<vmem>>, vector<8x6xf32>,
    %cst_23 = arith.constant 0.000000e+00 : f32
    %24 = vector.broadcast %cst_23 : f32 to vector<8x6xf32>
    %c0_24 = arith.constant 0 : index
    %c283 = arith.constant 283 : index
    %25 = vector.load %arg5[%c0_24, %c283] : memref<8x490xf32, #tpu.memory_space<vmem>>, vector<8x6xf32>
    tpu.vector_store %arg5[%c0_24, %c283], %24 {strides = array<i32>} : memref<8x490xf32, #tpu.memory_space<vmem>>, vector<8x6xf32>,
    %cst_25 = arith.constant 0.000000e+00 : f32
    %26 = vector.broadcast %cst_25 : f32 to vector<8x6xf32>
    %c0_26 = arith.constant 0 : index
    %c305 = arith.constant 305 : index
    %27 = vector.load %arg5[%c0_26, %c305] : memref<8x490xf32, #tpu.memory_space<vmem>>, vector<8x6xf32>
    tpu.vector_store %arg5[%c0_26, %c305], %26 {strides = array<i32>} : memref<8x490xf32, #tpu.memory_space<vmem>>, vector<8x6xf32>,
    %cst_27 = arith.constant 0.000000e+00 : f32
    %28 = vector.broadcast %cst_27 : f32 to vector<8x6xf32>
    %c0_28 = arith.constant 0 : index
    %c327 = arith.constant 327 : index
    %29 = vector.load %arg5[%c0_28, %c327] : memref<8x490xf32, #tpu.memory_space<vmem>>, vector<8x6xf32>
    tpu.vector_store %arg5[%c0_28, %c327], %28 {strides = array<i32>} : memref<8x490xf32, #tpu.memory_space<vmem>>, vector<8x6xf32>,
    %cst_29 = arith.constant 0.000000e+00 : f32
    %30 = vector.broadcast %cst_29 : f32 to vector<8x6xf32>
    %c0_30 = arith.constant 0 : index
    %c349 = arith.constant 349 : index
    %31 = vector.load %arg5[%c0_30, %c349] : memref<8x490xf32, #tpu.memory_space<vmem>>, vector<8x6xf32>
    tpu.vector_store %arg5[%c0_30, %c349], %30 {strides = array<i32>} : memref<8x490xf32, #tpu.memory_space<vmem>>, vector<8x6xf32>,
    %cst_31 = arith.constant 0.000000e+00 : f32
    %32 = vector.broadcast %cst_31 : f32 to vector<8x6xf32>
    %c0_32 = arith.constant 0 : index
    %c371 = arith.constant 371 : index
    %33 = vector.load %arg5[%c0_32, %c371] : memref<8x490xf32, #tpu.memory_space<vmem>>, vector<8x6xf32>
    tpu.vector_store %arg5[%c0_32, %c371], %32 {strides = array<i32>} : memref<8x490xf32, #tpu.memory_space<vmem>>, vector<8x6xf32>,
    %cst_33 = arith.constant 0.000000e+00 : f32
    %34 = vector.broadcast %cst_33 : f32 to vector<8x6xf32>
    %c0_34 = arith.constant 0 : index
    %c393 = arith.constant 393 : index
    %35 = vector.load %arg5[%c0_34, %c393] : memref<8x490xf32, #tpu.memory_space<vmem>>, vector<8x6xf32>
    tpu.vector_store %arg5[%c0_34, %c393], %34 {strides = array<i32>} : memref<8x490xf32, #tpu.memory_space<vmem>>, vector<8x6xf32>,
    %c0_35 = arith.constant 0 : index
    %c0_36 = arith.constant 0 : index
    %c0_37 = arith.constant 0 : index
    %36 = vector.load %arg1[%c0_35, %c0_36, %c0_37] : memref<1x4x256xf32, #tpu.memory_space<vmem>>, vector<1x4x16xf32>
    %37 = vector.shape_cast %36 : vector<1x4x16xf32> to vector<4x16xf32>
    %c0_38 = arith.constant 0 : index
    %c69 = arith.constant 69 : index
    %38 = vector.load %arg5[%c0_38, %c69] : memref<8x490xf32, #tpu.memory_space<vmem>>, vector<4x16xf32>
    tpu.vector_store %arg5[%c0_38, %c69], %37 {strides = array<i32>} : memref<8x490xf32, #tpu.memory_space<vmem>>, vector<4x16xf32>,
    %c0_39 = arith.constant 0 : index
    %c0_40 = arith.constant 0 : index
    %c16 = arith.constant 16 : index
    %39 = vector.load %arg1[%c0_39, %c0_40, %c16] : memref<1x4x256xf32, #tpu.memory_space<vmem>>, vector<1x4x16xf32>
    %40 = vector.shape_cast %39 : vector<1x4x16xf32> to vector<4x16xf32>
    %c0_41 = arith.constant 0 : index
    %c91 = arith.constant 91 : index
    %41 = vector.load %arg5[%c0_41, %c91] : memref<8x490xf32, #tpu.memory_space<vmem>>, vector<4x16xf32>
    tpu.vector_store %arg5[%c0_41, %c91], %40 {strides = array<i32>} : memref<8x490xf32, #tpu.memory_space<vmem>>, vector<4x16xf32>,
    %c0_42 = arith.constant 0 : index
    %c0_43 = arith.constant 0 : index
    %c32 = arith.constant 32 : index
    %42 = vector.load %arg1[%c0_42, %c0_43, %c32] : memref<1x4x256xf32, #tpu.memory_space<vmem>>, vector<1x4x16xf32>
    %43 = vector.shape_cast %42 : vector<1x4x16xf32> to vector<4x16xf32>
    %c0_44 = arith.constant 0 : index
    %c113 = arith.constant 113 : index
    %44 = vector.load %arg5[%c0_44, %c113] : memref<8x490xf32, #tpu.memory_space<vmem>>, vector<4x16xf32>
    tpu.vector_store %arg5[%c0_44, %c113], %43 {strides = array<i32>} : memref<8x490xf32, #tpu.memory_space<vmem>>, vector<4x16xf32>,
    %c0_45 = arith.constant 0 : index
    %c0_46 = arith.constant 0 : index
    %c48 = arith.constant 48 : index
    %45 = vector.load %arg1[%c0_45, %c0_46, %c48] : memref<1x4x256xf32, #tpu.memory_space<vmem>>, vector<1x4x16xf32>
    %46 = vector.shape_cast %45 : vector<1x4x16xf32> to vector<4x16xf32>
    %c0_47 = arith.constant 0 : index
    %c135 = arith.constant 135 : index
    %47 = vector.load %arg5[%c0_47, %c135] : memref<8x490xf32, #tpu.memory_space<vmem>>, vector<4x16xf32>
    tpu.vector_store %arg5[%c0_47, %c135], %46 {strides = array<i32>} : memref<8x490xf32, #tpu.memory_space<vmem>>, vector<4x16xf32>,
    %c0_48 = arith.constant 0 : index
    %c0_49 = arith.constant 0 : index
    %c64 = arith.constant 64 : index
    %48 = vector.load %arg1[%c0_48, %c0_49, %c64] : memref<1x4x256xf32, #tpu.memory_space<vmem>>, vector<1x4x16xf32>
    %49 = vector.shape_cast %48 : vector<1x4x16xf32> to vector<4x16xf32>
    %c0_50 = arith.constant 0 : index
    %c157 = arith.constant 157 : index
    %50 = vector.load %arg5[%c0_50, %c157] : memref<8x490xf32, #tpu.memory_space<vmem>>, vector<4x16xf32>
    tpu.vector_store %arg5[%c0_50, %c157], %49 {strides = array<i32>} : memref<8x490xf32, #tpu.memory_space<vmem>>, vector<4x16xf32>,
    %c0_51 = arith.constant 0 : index
    %c0_52 = arith.constant 0 : index
    %c80 = arith.constant 80 : index
    %51 = vector.load %arg1[%c0_51, %c0_52, %c80] : memref<1x4x256xf32, #tpu.memory_space<vmem>>, vector<1x4x16xf32>
    %52 = vector.shape_cast %51 : vector<1x4x16xf32> to vector<4x16xf32>
    %c0_53 = arith.constant 0 : index
    %c179 = arith.constant 179 : index
    %53 = vector.load %arg5[%c0_53, %c179] : memref<8x490xf32, #tpu.memory_space<vmem>>, vector<4x16xf32>
    tpu.vector_store %arg5[%c0_53, %c179], %52 {strides = array<i32>} : memref<8x490xf32, #tpu.memory_space<vmem>>, vector<4x16xf32>,
    %c0_54 = arith.constant 0 : index
    %c0_55 = arith.constant 0 : index
    %c96 = arith.constant 96 : index
    %54 = vector.load %arg1[%c0_54, %c0_55, %c96] : memref<1x4x256xf32, #tpu.memory_space<vmem>>, vector<1x4x16xf32>
    %55 = vector.shape_cast %54 : vector<1x4x16xf32> to vector<4x16xf32>
    %c0_56 = arith.constant 0 : index
    %c201 = arith.constant 201 : index
    %56 = vector.load %arg5[%c0_56, %c201] : memref<8x490xf32, #tpu.memory_space<vmem>>, vector<4x16xf32>
    tpu.vector_store %arg5[%c0_56, %c201], %55 {strides = array<i32>} : memref<8x490xf32, #tpu.memory_space<vmem>>, vector<4x16xf32>,
    %c0_57 = arith.constant 0 : index
    %c0_58 = arith.constant 0 : index
    %c112 = arith.constant 112 : index
    %57 = vector.load %arg1[%c0_57, %c0_58, %c112] : memref<1x4x256xf32, #tpu.memory_space<vmem>>, vector<1x4x16xf32>
    %58 = vector.shape_cast %57 : vector<1x4x16xf32> to vector<4x16xf32>
    %c0_59 = arith.constant 0 : index
    %c223 = arith.constant 223 : index
    %59 = vector.load %arg5[%c0_59, %c223] : memref<8x490xf32, #tpu.memory_space<vmem>>, vector<4x16xf32>
    tpu.vector_store %arg5[%c0_59, %c223], %58 {strides = array<i32>} : memref<8x490xf32, #tpu.memory_space<vmem>>, vector<4x16xf32>,
    %c0_60 = arith.constant 0 : index
    %c0_61 = arith.constant 0 : index
    %c128 = arith.constant 128 : index
    %60 = vector.load %arg1[%c0_60, %c0_61, %c128] : memref<1x4x256xf32, #tpu.memory_space<vmem>>, vector<1x4x16xf32>
    %61 = vector.shape_cast %60 : vector<1x4x16xf32> to vector<4x16xf32>
    %c0_62 = arith.constant 0 : index
    %c245 = arith.constant 245 : index
    %62 = vector.load %arg5[%c0_62, %c245] : memref<8x490xf32, #tpu.memory_space<vmem>>, vector<4x16xf32>
    tpu.vector_store %arg5[%c0_62, %c245], %61 {strides = array<i32>} : memref<8x490xf32, #tpu.memory_space<vmem>>, vector<4x16xf32>,
    %c0_63 = arith.constant 0 : index
    %c0_64 = arith.constant 0 : index
    %c144 = arith.constant 144 : index
    %63 = vector.load %arg1[%c0_63, %c0_64, %c144] : memref<1x4x256xf32, #tpu.memory_space<vmem>>, vector<1x4x16xf32>
    %64 = vector.shape_cast %63 : vector<1x4x16xf32> to vector<4x16xf32>
    %c0_65 = arith.constant 0 : index
    %c267 = arith.constant 267 : index
    %65 = vector.load %arg5[%c0_65, %c267] : memref<8x490xf32, #tpu.memory_space<vmem>>, vector<4x16xf32>
    tpu.vector_store %arg5[%c0_65, %c267], %64 {strides = array<i32>} : memref<8x490xf32, #tpu.memory_space<vmem>>, vector<4x16xf32>,
    %c0_66 = arith.constant 0 : index
    %c0_67 = arith.constant 0 : index
    %c160 = arith.constant 160 : index
    %66 = vector.load %arg1[%c0_66, %c0_67, %c160] : memref<1x4x256xf32, #tpu.memory_space<vmem>>, vector<1x4x16xf32>
    %67 = vector.shape_cast %66 : vector<1x4x16xf32> to vector<4x16xf32>
    %c0_68 = arith.constant 0 : index
    %c289 = arith.constant 289 : index
    %68 = vector.load %arg5[%c0_68, %c289] : memref<8x490xf32, #tpu.memory_space<vmem>>, vector<4x16xf32>
    tpu.vector_store %arg5[%c0_68, %c289], %67 {strides = array<i32>} : memref<8x490xf32, #tpu.memory_space<vmem>>, vector<4x16xf32>,
    %c0_69 = arith.constant 0 : index
    %c0_70 = arith.constant 0 : index
    %c176 = arith.constant 176 : index
    %69 = vector.load %arg1[%c0_69, %c0_70, %c176] : memref<1x4x256xf32, #tpu.memory_space<vmem>>, vector<1x4x16xf32>
    %70 = vector.shape_cast %69 : vector<1x4x16xf32> to vector<4x16xf32>
    %c0_71 = arith.constant 0 : index
    %c311 = arith.constant 311 : index
    %71 = vector.load %arg5[%c0_71, %c311] : memref<8x490xf32, #tpu.memory_space<vmem>>, vector<4x16xf32>
    tpu.vector_store %arg5[%c0_71, %c311], %70 {strides = array<i32>} : memref<8x490xf32, #tpu.memory_space<vmem>>, vector<4x16xf32>,
    %c0_72 = arith.constant 0 : index
    %c0_73 = arith.constant 0 : index
    %c192 = arith.constant 192 : index
    %72 = vector.load %arg1[%c0_72, %c0_73, %c192] : memref<1x4x256xf32, #tpu.memory_space<vmem>>, vector<1x4x16xf32>
    %73 = vector.shape_cast %72 : vector<1x4x16xf32> to vector<4x16xf32>
    %c0_74 = arith.constant 0 : index
    %c333 = arith.constant 333 : index
    %74 = vector.load %arg5[%c0_74, %c333] : memref<8x490xf32, #tpu.memory_space<vmem>>, vector<4x16xf32>
    tpu.vector_store %arg5[%c0_74, %c333], %73 {strides = array<i32>} : memref<8x490xf32, #tpu.memory_space<vmem>>, vector<4x16xf32>,
    %c0_75 = arith.constant 0 : index
    %c0_76 = arith.constant 0 : index
    %c208 = arith.constant 208 : index
    %75 = vector.load %arg1[%c0_75, %c0_76, %c208] : memref<1x4x256xf32, #tpu.memory_space<vmem>>, vector<1x4x16xf32>
    %76 = vector.shape_cast %75 : vector<1x4x16xf32> to vector<4x16xf32>
    %c0_77 = arith.constant 0 : index
    %c355 = arith.constant 355 : index
    %77 = vector.load %arg5[%c0_77, %c355] : memref<8x490xf32, #tpu.memory_space<vmem>>, vector<4x16xf32>
    tpu.vector_store %arg5[%c0_77, %c355], %76 {strides = array<i32>} : memref<8x490xf32, #tpu.memory_space<vmem>>, vector<4x16xf32>,
    %c0_78 = arith.constant 0 : index
    %c0_79 = arith.constant 0 : index
    %c224 = arith.constant 224 : index
    %78 = vector.load %arg1[%c0_78, %c0_79, %c224] : memref<1x4x256xf32, #tpu.memory_space<vmem>>, vector<1x4x16xf32>
    %79 = vector.shape_cast %78 : vector<1x4x16xf32> to vector<4x16xf32>
    %c0_80 = arith.constant 0 : index
    %c377 = arith.constant 377 : index
    %80 = vector.load %arg5[%c0_80, %c377] : memref<8x490xf32, #tpu.memory_space<vmem>>, vector<4x16xf32>
    tpu.vector_store %arg5[%c0_80, %c377], %79 {strides = array<i32>} : memref<8x490xf32, #tpu.memory_space<vmem>>, vector<4x16xf32>,
    %c0_81 = arith.constant 0 : index
    %c0_82 = arith.constant 0 : index
    %c240 = arith.constant 240 : index
    %81 = vector.load %arg1[%c0_81, %c0_82, %c240] : memref<1x4x256xf32, #tpu.memory_space<vmem>>, vector<1x4x16xf32>
    %82 = vector.shape_cast %81 : vector<1x4x16xf32> to vector<4x16xf32>
    %c0_83 = arith.constant 0 : index
    %c399 = arith.constant 399 : index
    %83 = vector.load %arg5[%c0_83, %c399] : memref<8x490xf32, #tpu.memory_space<vmem>>, vector<4x16xf32>
    tpu.vector_store %arg5[%c0_83, %c399], %82 {strides = array<i32>} : memref<8x490xf32, #tpu.memory_space<vmem>>, vector<4x16xf32>,
    %c0_84 = arith.constant 0 : index
    %c0_85 = arith.constant 0 : index
    %84 = vector.load %arg5[%c0_84, %c0_85] : memref<8x490xf32, #tpu.memory_space<vmem>>, vector<8x358xf32>
    %85 = arith.truncf %84 : vector<8x358xf32> to vector<8x358xbf16>
    %86 = vector.extract_strided_slice %85 {offsets = [0, 0], sizes = [8, 352], strides = [1, 1]} : vector<8x358xbf16> to vector<8x352xbf16>
    %c0_86 = arith.constant 0 : index
    %c0_87 = arith.constant 0 : index
    %87 = vector.load %arg6[%c0_86, %c0_87] : memref<392x352xbf16, #tpu.memory_space<vmem>>, vector<8x352xbf16>
    tpu.vector_store %arg6[%c0_86, %c0_87], %86 {strides = array<i32>} : memref<392x352xbf16, #tpu.memory_space<vmem>>, vector<8x352xbf16>,
    %88 = vector.extract_strided_slice %85 {offsets = [0, 1], sizes = [8, 352], strides = [1, 1]} : vector<8x358xbf16> to vector<8x352xbf16>
    %c8 = arith.constant 8 : index
    %c0_88 = arith.constant 0 : index
    %89 = vector.load %arg6[%c8, %c0_88] : memref<392x352xbf16, #tpu.memory_space<vmem>>, vector<8x352xbf16>
    tpu.vector_store %arg6[%c8, %c0_88], %88 {strides = array<i32>} : memref<392x352xbf16, #tpu.memory_space<vmem>>, vector<8x352xbf16>,
    %90 = vector.extract_strided_slice %85 {offsets = [0, 2], sizes = [8, 352], strides = [1, 1]} : vector<8x358xbf16> to vector<8x352xbf16>
    %c16_89 = arith.constant 16 : index
    %c0_90 = arith.constant 0 : index
    %91 = vector.load %arg6[%c16_89, %c0_90] : memref<392x352xbf16, #tpu.memory_space<vmem>>, vector<8x352xbf16>
    tpu.vector_store %arg6[%c16_89, %c0_90], %90 {strides = array<i32>} : memref<392x352xbf16, #tpu.memory_space<vmem>>, vector<8x352xbf16>,
    %92 = vector.extract_strided_slice %85 {offsets = [0, 3], sizes = [8, 352], strides = [1, 1]} : vector<8x358xbf16> to vector<8x352xbf16>
    %c24 = arith.constant 24 : index
    %c0_91 = arith.constant 0 : index
    %93 = vector.load %arg6[%c24, %c0_91] : memref<392x352xbf16, #tpu.memory_space<vmem>>, vector<8x352xbf16>
    tpu.vector_store %arg6[%c24, %c0_91], %92 {strides = array<i32>} : memref<392x352xbf16, #tpu.memory_space<vmem>>, vector<8x352xbf16>,
    %94 = vector.extract_strided_slice %85 {offsets = [0, 4], sizes = [8, 352], strides = [1, 1]} : vector<8x358xbf16> to vector<8x352xbf16>
    %c32_92 = arith.constant 32 : index
    %c0_93 = arith.constant 0 : index
    %95 = vector.load %arg6[%c32_92, %c0_93] : memref<392x352xbf16, #tpu.memory_space<vmem>>, vector<8x352xbf16>
    tpu.vector_store %arg6[%c32_92, %c0_93], %94 {strides = array<i32>} : memref<392x352xbf16, #tpu.memory_space<vmem>>, vector<8x352xbf16>,
    %96 = vector.extract_strided_slice %85 {offsets = [0, 5], sizes = [8, 352], strides = [1, 1]} : vector<8x358xbf16> to vector<8x352xbf16>
    %c40 = arith.constant 40 : index
    %c0_94 = arith.constant 0 : index
    %97 = vector.load %arg6[%c40, %c0_94] : memref<392x352xbf16, #tpu.memory_space<vmem>>, vector<8x352xbf16>
    tpu.vector_store %arg6[%c40, %c0_94], %96 {strides = array<i32>} : memref<392x352xbf16, #tpu.memory_space<vmem>>, vector<8x352xbf16>,
    %98 = vector.extract_strided_slice %85 {offsets = [0, 6], sizes = [8, 352], strides = [1, 1]} : vector<8x358xbf16> to vector<8x352xbf16>
    %c48_95 = arith.constant 48 : index
    %c0_96 = arith.constant 0 : index
    %99 = vector.load %arg6[%c48_95, %c0_96] : memref<392x352xbf16, #tpu.memory_space<vmem>>, vector<8x352xbf16>
    tpu.vector_store %arg6[%c48_95, %c0_96], %98 {strides = array<i32>} : memref<392x352xbf16, #tpu.memory_space<vmem>>, vector<8x352xbf16>,
    %c0_97 = arith.constant 0 : index
    %c22 = arith.constant 22 : index
    %100 = vector.load %arg5[%c0_97, %c22] : memref<8x490xf32, #tpu.memory_space<vmem>>, vector<8x358xf32>
    %101 = arith.truncf %100 : vector<8x358xf32> to vector<8x358xbf16>
    %102 = vector.extract_strided_slice %101 {offsets = [0, 0], sizes = [8, 352], strides = [1, 1]} : vector<8x358xbf16> to vector<8x352xbf16>
    %c56 = arith.constant 56 : index
    %c0_98 = arith.constant 0 : index
    %103 = vector.load %arg6[%c56, %c0_98] : memref<392x352xbf16, #tpu.memory_space<vmem>>, vector<8x352xbf16>
    tpu.vector_store %arg6[%c56, %c0_98], %102 {strides = array<i32>} : memref<392x352xbf16, #tpu.memory_space<vmem>>, vector<8x352xbf16>,
    %104 = vector.extract_strided_slice %101 {offsets = [0, 1], sizes = [8, 352], strides = [1, 1]} : vector<8x358xbf16> to vector<8x352xbf16>
    %c64_99 = arith.constant 64 : index
    %c0_100 = arith.constant 0 : index
    %105 = vector.load %arg6[%c64_99, %c0_100] : memref<392x352xbf16, #tpu.memory_space<vmem>>, vector<8x352xbf16>
    tpu.vector_store %arg6[%c64_99, %c0_100], %104 {strides = array<i32>} : memref<392x352xbf16, #tpu.memory_space<vmem>>, vector<8x352xbf16>,
    %106 = vector.extract_strided_slice %101 {offsets = [0, 2], sizes = [8, 352], strides = [1, 1]} : vector<8x358xbf16> to vector<8x352xbf16>
    %c72 = arith.constant 72 : index
    %c0_101 = arith.constant 0 : index
    %107 = vector.load %arg6[%c72, %c0_101] : memref<392x352xbf16, #tpu.memory_space<vmem>>, vector<8x352xbf16>
    tpu.vector_store %arg6[%c72, %c0_101], %106 {strides = array<i32>} : memref<392x352xbf16, #tpu.memory_space<vmem>>, vector<8x352xbf16>,
    %108 = vector.extract_strided_slice %101 {offsets = [0, 3], sizes = [8, 352], strides = [1, 1]} : vector<8x358xbf16> to vector<8x352xbf16>
    %c80_102 = arith.constant 80 : index
    %c0_103 = arith.constant 0 : index
    %109 = vector.load %arg6[%c80_102, %c0_103] : memref<392x352xbf16, #tpu.memory_space<vmem>>, vector<8x352xbf16>
    tpu.vector_store %arg6[%c80_102, %c0_103], %108 {strides = array<i32>} : memref<392x352xbf16, #tpu.memory_space<vmem>>, vector<8x352xbf16>,
    %110 = vector.extract_strided_slice %101 {offsets = [0, 4], sizes = [8, 352], strides = [1, 1]} : vector<8x358xbf16> to vector<8x352xbf16>
    %c88 = arith.constant 88 : index
    %c0_104 = arith.constant 0 : index
    %111 = vector.load %arg6[%c88, %c0_104] : memref<392x352xbf16, #tpu.memory_space<vmem>>, vector<8x352xbf16>
    tpu.vector_store %arg6[%c88, %c0_104], %110 {strides = array<i32>} : memref<392x352xbf16, #tpu.memory_space<vmem>>, vector<8x352xbf16>,
    %112 = vector.extract_strided_slice %101 {offsets = [0, 5], sizes = [8, 352], strides = [1, 1]} : vector<8x358xbf16> to vector<8x352xbf16>
    %c96_105 = arith.constant 96 : index
    %c0_106 = arith.constant 0 : index
    %113 = vector.load %arg6[%c96_105, %c0_106] : memref<392x352xbf16, #tpu.memory_space<vmem>>, vector<8x352xbf16>
    tpu.vector_store %arg6[%c96_105, %c0_106], %112 {strides = array<i32>} : memref<392x352xbf16, #tpu.memory_space<vmem>>, vector<8x352xbf16>,
    %114 = vector.extract_strided_slice %101 {offsets = [0, 6], sizes = [8, 352], strides = [1, 1]} : vector<8x358xbf16> to vector<8x352xbf16>
    %c104 = arith.constant 104 : index
    %c0_107 = arith.constant 0 : index
    %115 = vector.load %arg6[%c104, %c0_107] : memref<392x352xbf16, #tpu.memory_space<vmem>>, vector<8x352xbf16>
    tpu.vector_store %arg6[%c104, %c0_107], %114 {strides = array<i32>} : memref<392x352xbf16, #tpu.memory_space<vmem>>, vector<8x352xbf16>,
    %c0_108 = arith.constant 0 : index
    %c44 = arith.constant 44 : index
    %116 = vector.load %arg5[%c0_108, %c44] : memref<8x490xf32, #tpu.memory_space<vmem>>, vector<8x358xf32>
    %117 = arith.truncf %116 : vector<8x358xf32> to vector<8x358xbf16>
    %118 = vector.extract_strided_slice %117 {offsets = [0, 0], sizes = [8, 352], strides = [1, 1]} : vector<8x358xbf16> to vector<8x352xbf16>
    %c112_109 = arith.constant 112 : index
    %c0_110 = arith.constant 0 : index
    %119 = vector.load %arg6[%c112_109, %c0_110] : memref<392x352xbf16, #tpu.memory_space<vmem>>, vector<8x352xbf16>
    tpu.vector_store %arg6[%c112_109, %c0_110], %118 {strides = array<i32>} : memref<392x352xbf16, #tpu.memory_space<vmem>>, vector<8x352xbf16>,
    %120 = vector.extract_strided_slice %117 {offsets = [0, 1], sizes = [8, 352], strides = [1, 1]} : vector<8x358xbf16> to vector<8x352xbf16>
    %c120 = arith.constant 120 : index
    %c0_111 = arith.constant 0 : index
    %121 = vector.load %arg6[%c120, %c0_111] : memref<392x352xbf16, #tpu.memory_space<vmem>>, vector<8x352xbf16>
    tpu.vector_store %arg6[%c120, %c0_111], %120 {strides = array<i32>} : memref<392x352xbf16, #tpu.memory_space<vmem>>, vector<8x352xbf16>,
    %122 = vector.extract_strided_slice %117 {offsets = [0, 2], sizes = [8, 352], strides = [1, 1]} : vector<8x358xbf16> to vector<8x352xbf16>
    %c128_112 = arith.constant 128 : index
    %c0_113 = arith.constant 0 : index
    %123 = vector.load %arg6[%c128_112, %c0_113] : memref<392x352xbf16, #tpu.memory_space<vmem>>, vector<8x352xbf16>
    tpu.vector_store %arg6[%c128_112, %c0_113], %122 {strides = array<i32>} : memref<392x352xbf16, #tpu.memory_space<vmem>>, vector<8x352xbf16>,
    %124 = vector.extract_strided_slice %117 {offsets = [0, 3], sizes = [8, 352], strides = [1, 1]} : vector<8x358xbf16> to vector<8x352xbf16>
    %c136 = arith.constant 136 : index
    %c0_114 = arith.constant 0 : index
    %125 = vector.load %arg6[%c136, %c0_114] : memref<392x352xbf16, #tpu.memory_space<vmem>>, vector<8x352xbf16>
    tpu.vector_store %arg6[%c136, %c0_114], %124 {strides = array<i32>} : memref<392x352xbf16, #tpu.memory_space<vmem>>, vector<8x352xbf16>,
    %126 = vector.extract_strided_slice %117 {offsets = [0, 4], sizes = [8, 352], strides = [1, 1]} : vector<8x358xbf16> to vector<8x352xbf16>
    %c144_115 = arith.constant 144 : index
    %c0_116 = arith.constant 0 : index
    %127 = vector.load %arg6[%c144_115, %c0_116] : memref<392x352xbf16, #tpu.memory_space<vmem>>, vector<8x352xbf16>
    tpu.vector_store %arg6[%c144_115, %c0_116], %126 {strides = array<i32>} : memref<392x352xbf16, #tpu.memory_space<vmem>>, vector<8x352xbf16>,
    %128 = vector.extract_strided_slice %117 {offsets = [0, 5], sizes = [8, 352], strides = [1, 1]} : vector<8x358xbf16> to vector<8x352xbf16>
    %c152 = arith.constant 152 : index
    %c0_117 = arith.constant 0 : index
    %129 = vector.load %arg6[%c152, %c0_117] : memref<392x352xbf16, #tpu.memory_space<vmem>>, vector<8x352xbf16>
    tpu.vector_store %arg6[%c152, %c0_117], %128 {strides = array<i32>} : memref<392x352xbf16, #tpu.memory_space<vmem>>, vector<8x352xbf16>,
    %130 = vector.extract_strided_slice %117 {offsets = [0, 6], sizes = [8, 352], strides = [1, 1]} : vector<8x358xbf16> to vector<8x352xbf16>
    %c160_118 = arith.constant 160 : index
    %c0_119 = arith.constant 0 : index
    %131 = vector.load %arg6[%c160_118, %c0_119] : memref<392x352xbf16, #tpu.memory_space<vmem>>, vector<8x352xbf16>
    tpu.vector_store %arg6[%c160_118, %c0_119], %130 {strides = array<i32>} : memref<392x352xbf16, #tpu.memory_space<vmem>>, vector<8x352xbf16>,
    %c0_120 = arith.constant 0 : index
    %c66 = arith.constant 66 : index
    %132 = vector.load %arg5[%c0_120, %c66] : memref<8x490xf32, #tpu.memory_space<vmem>>, vector<8x358xf32>
    %133 = arith.truncf %132 : vector<8x358xf32> to vector<8x358xbf16>
    %134 = vector.extract_strided_slice %133 {offsets = [0, 0], sizes = [8, 352], strides = [1, 1]} : vector<8x358xbf16> to vector<8x352xbf16>
    %c168 = arith.constant 168 : index
    %c0_121 = arith.constant 0 : index
    %135 = vector.load %arg6[%c168, %c0_121] : memref<392x352xbf16, #tpu.memory_space<vmem>>, vector<8x352xbf16>
    tpu.vector_store %arg6[%c168, %c0_121], %134 {strides = array<i32>} : memref<392x352xbf16, #tpu.memory_space<vmem>>, vector<8x352xbf16>,
    %136 = vector.extract_strided_slice %133 {offsets = [0, 1], sizes = [8, 352], strides = [1, 1]} : vector<8x358xbf16> to vector<8x352xbf16>
    %c176_122 = arith.constant 176 : index
    %c0_123 = arith.constant 0 : index
    %137 = vector.load %arg6[%c176_122, %c0_123] : memref<392x352xbf16, #tpu.memory_space<vmem>>, vector<8x352xbf16>
    tpu.vector_store %arg6[%c176_122, %c0_123], %136 {strides = array<i32>} : memref<392x352xbf16, #tpu.memory_space<vmem>>, vector<8x352xbf16>,
    %138 = vector.extract_strided_slice %133 {offsets = [0, 2], sizes = [8, 352], strides = [1, 1]} : vector<8x358xbf16> to vector<8x352xbf16>
    %c184 = arith.constant 184 : index
    %c0_124 = arith.constant 0 : index
    %139 = vector.load %arg6[%c184, %c0_124] : memref<392x352xbf16, #tpu.memory_space<vmem>>, vector<8x352xbf16>
    tpu.vector_store %arg6[%c184, %c0_124], %138 {strides = array<i32>} : memref<392x352xbf16, #tpu.memory_space<vmem>>, vector<8x352xbf16>,
    %140 = vector.extract_strided_slice %133 {offsets = [0, 3], sizes = [8, 352], strides = [1, 1]} : vector<8x358xbf16> to vector<8x352xbf16>
    %c192_125 = arith.constant 192 : index
    %c0_126 = arith.constant 0 : index
    %141 = vector.load %arg6[%c192_125, %c0_126] : memref<392x352xbf16, #tpu.memory_space<vmem>>, vector<8x352xbf16>
    tpu.vector_store %arg6[%c192_125, %c0_126], %140 {strides = array<i32>} : memref<392x352xbf16, #tpu.memory_space<vmem>>, vector<8x352xbf16>,
    %142 = vector.extract_strided_slice %133 {offsets = [0, 4], sizes = [8, 352], strides = [1, 1]} : vector<8x358xbf16> to vector<8x352xbf16>
    %c200 = arith.constant 200 : index
    %c0_127 = arith.constant 0 : index
    %143 = vector.load %arg6[%c200, %c0_127] : memref<392x352xbf16, #tpu.memory_space<vmem>>, vector<8x352xbf16>
    tpu.vector_store %arg6[%c200, %c0_127], %142 {strides = array<i32>} : memref<392x352xbf16, #tpu.memory_space<vmem>>, vector<8x352xbf16>,
    %144 = vector.extract_strided_slice %133 {offsets = [0, 5], sizes = [8, 352], strides = [1, 1]} : vector<8x358xbf16> to vector<8x352xbf16>
    %c208_128 = arith.constant 208 : index
    %c0_129 = arith.constant 0 : index
    %145 = vector.load %arg6[%c208_128, %c0_129] : memref<392x352xbf16, #tpu.memory_space<vmem>>, vector<8x352xbf16>
    tpu.vector_store %arg6[%c208_128, %c0_129], %144 {strides = array<i32>} : memref<392x352xbf16, #tpu.memory_space<vmem>>, vector<8x352xbf16>,
    %146 = vector.extract_strided_slice %133 {offsets = [0, 6], sizes = [8, 352], strides = [1, 1]} : vector<8x358xbf16> to vector<8x352xbf16>
    %c216 = arith.constant 216 : index
    %c0_130 = arith.constant 0 : index
    %147 = vector.load %arg6[%c216, %c0_130] : memref<392x352xbf16, #tpu.memory_space<vmem>>, vector<8x352xbf16>
    tpu.vector_store %arg6[%c216, %c0_130], %146 {strides = array<i32>} : memref<392x352xbf16, #tpu.memory_space<vmem>>, vector<8x352xbf16>,
    %c0_131 = arith.constant 0 : index
    %c88_132 = arith.constant 88 : index
    %148 = vector.load %arg5[%c0_131, %c88_132] : memref<8x490xf32, #tpu.memory_space<vmem>>, vector<8x358xf32>
    %149 = arith.truncf %148 : vector<8x358xf32> to vector<8x358xbf16>
    %150 = vector.extract_strided_slice %149 {offsets = [0, 0], sizes = [8, 352], strides = [1, 1]} : vector<8x358xbf16> to vector<8x352xbf16>
    %c224_133 = arith.constant 224 : index
    %c0_134 = arith.constant 0 : index
    %151 = vector.load %arg6[%c224_133, %c0_134] : memref<392x352xbf16, #tpu.memory_space<vmem>>, vector<8x352xbf16>
    tpu.vector_store %arg6[%c224_133, %c0_134], %150 {strides = array<i32>} : memref<392x352xbf16, #tpu.memory_space<vmem>>, vector<8x352xbf16>,
    %152 = vector.extract_strided_slice %149 {offsets = [0, 1], sizes = [8, 352], strides = [1, 1]} : vector<8x358xbf16> to vector<8x352xbf16>
    %c232 = arith.constant 232 : index
    %c0_135 = arith.constant 0 : index
    %153 = vector.load %arg6[%c232, %c0_135] : memref<392x352xbf16, #tpu.memory_space<vmem>>, vector<8x352xbf16>
    tpu.vector_store %arg6[%c232, %c0_135], %152 {strides = array<i32>} : memref<392x352xbf16, #tpu.memory_space<vmem>>, vector<8x352xbf16>,
    %154 = vector.extract_strided_slice %149 {offsets = [0, 2], sizes = [8, 352], strides = [1, 1]} : vector<8x358xbf16> to vector<8x352xbf16>
    %c240_136 = arith.constant 240 : index
    %c0_137 = arith.constant 0 : index
    %155 = vector.load %arg6[%c240_136, %c0_137] : memref<392x352xbf16, #tpu.memory_space<vmem>>, vector<8x352xbf16>
    tpu.vector_store %arg6[%c240_136, %c0_137], %154 {strides = array<i32>} : memref<392x352xbf16, #tpu.memory_space<vmem>>, vector<8x352xbf16>,
    %156 = vector.extract_strided_slice %149 {offsets = [0, 3], sizes = [8, 352], strides = [1, 1]} : vector<8x358xbf16> to vector<8x352xbf16>
    %c248 = arith.constant 248 : index
    %c0_138 = arith.constant 0 : index
    %157 = vector.load %arg6[%c248, %c0_138] : memref<392x352xbf16, #tpu.memory_space<vmem>>, vector<8x352xbf16>
    tpu.vector_store %arg6[%c248, %c0_138], %156 {strides = array<i32>} : memref<392x352xbf16, #tpu.memory_space<vmem>>, vector<8x352xbf16>,
    %158 = vector.extract_strided_slice %149 {offsets = [0, 4], sizes = [8, 352], strides = [1, 1]} : vector<8x358xbf16> to vector<8x352xbf16>
    %c256 = arith.constant 256 : index
    %c0_139 = arith.constant 0 : index
    %159 = vector.load %arg6[%c256, %c0_139] : memref<392x352xbf16, #tpu.memory_space<vmem>>, vector<8x352xbf16>
    tpu.vector_store %arg6[%c256, %c0_139], %158 {strides = array<i32>} : memref<392x352xbf16, #tpu.memory_space<vmem>>, vector<8x352xbf16>,
    %160 = vector.extract_strided_slice %149 {offsets = [0, 5], sizes = [8, 352], strides = [1, 1]} : vector<8x358xbf16> to vector<8x352xbf16>
    %c264 = arith.constant 264 : index
    %c0_140 = arith.constant 0 : index
    %161 = vector.load %arg6[%c264, %c0_140] : memref<392x352xbf16, #tpu.memory_space<vmem>>, vector<8x352xbf16>
    tpu.vector_store %arg6[%c264, %c0_140], %160 {strides = array<i32>} : memref<392x352xbf16, #tpu.memory_space<vmem>>, vector<8x352xbf16>,
    %162 = vector.extract_strided_slice %149 {offsets = [0, 6], sizes = [8, 352], strides = [1, 1]} : vector<8x358xbf16> to vector<8x352xbf16>
    %c272 = arith.constant 272 : index
    %c0_141 = arith.constant 0 : index
    %163 = vector.load %arg6[%c272, %c0_141] : memref<392x352xbf16, #tpu.memory_space<vmem>>, vector<8x352xbf16>
    tpu.vector_store %arg6[%c272, %c0_141], %162 {strides = array<i32>} : memref<392x352xbf16, #tpu.memory_space<vmem>>, vector<8x352xbf16>,
    %c0_142 = arith.constant 0 : index
    %c110 = arith.constant 110 : index
    %164 = vector.load %arg5[%c0_142, %c110] : memref<8x490xf32, #tpu.memory_space<vmem>>, vector<8x358xf32>
    %165 = arith.truncf %164 : vector<8x358xf32> to vector<8x358xbf16>
    %166 = vector.extract_strided_slice %165 {offsets = [0, 0], sizes = [8, 352], strides = [1, 1]} : vector<8x358xbf16> to vector<8x352xbf16>
    %c280 = arith.constant 280 : index
    %c0_143 = arith.constant 0 : index
    %167 = vector.load %arg6[%c280, %c0_143] : memref<392x352xbf16, #tpu.memory_space<vmem>>, vector<8x352xbf16>
    tpu.vector_store %arg6[%c280, %c0_143], %166 {strides = array<i32>} : memref<392x352xbf16, #tpu.memory_space<vmem>>, vector<8x352xbf16>,
    %168 = vector.extract_strided_slice %165 {offsets = [0, 1], sizes = [8, 352], strides = [1, 1]} : vector<8x358xbf16> to vector<8x352xbf16>
    %c288 = arith.constant 288 : index
    %c0_144 = arith.constant 0 : index
    %169 = vector.load %arg6[%c288, %c0_144] : memref<392x352xbf16, #tpu.memory_space<vmem>>, vector<8x352xbf16>
    tpu.vector_store %arg6[%c288, %c0_144], %168 {strides = array<i32>} : memref<392x352xbf16, #tpu.memory_space<vmem>>, vector<8x352xbf16>,
    %170 = vector.extract_strided_slice %165 {offsets = [0, 2], sizes = [8, 352], strides = [1, 1]} : vector<8x358xbf16> to vector<8x352xbf16>
    %c296 = arith.constant 296 : index
    %c0_145 = arith.constant 0 : index
    %171 = vector.load %arg6[%c296, %c0_145] : memref<392x352xbf16, #tpu.memory_space<vmem>>, vector<8x352xbf16>
    tpu.vector_store %arg6[%c296, %c0_145], %170 {strides = array<i32>} : memref<392x352xbf16, #tpu.memory_space<vmem>>, vector<8x352xbf16>,
    %172 = vector.extract_strided_slice %165 {offsets = [0, 3], sizes = [8, 352], strides = [1, 1]} : vector<8x358xbf16> to vector<8x352xbf16>
    %c304 = arith.constant 304 : index
    %c0_146 = arith.constant 0 : index
    %173 = vector.load %arg6[%c304, %c0_146] : memref<392x352xbf16, #tpu.memory_space<vmem>>, vector<8x352xbf16>
    tpu.vector_store %arg6[%c304, %c0_146], %172 {strides = array<i32>} : memref<392x352xbf16, #tpu.memory_space<vmem>>, vector<8x352xbf16>,
    %174 = vector.extract_strided_slice %165 {offsets = [0, 4], sizes = [8, 352], strides = [1, 1]} : vector<8x358xbf16> to vector<8x352xbf16>
    %c312 = arith.constant 312 : index
    %c0_147 = arith.constant 0 : index
    %175 = vector.load %arg6[%c312, %c0_147] : memref<392x352xbf16, #tpu.memory_space<vmem>>, vector<8x352xbf16>
    tpu.vector_store %arg6[%c312, %c0_147], %174 {strides = array<i32>} : memref<392x352xbf16, #tpu.memory_space<vmem>>, vector<8x352xbf16>,
    %176 = vector.extract_strided_slice %165 {offsets = [0, 5], sizes = [8, 352], strides = [1, 1]} : vector<8x358xbf16> to vector<8x352xbf16>
    %c320 = arith.constant 320 : index
    %c0_148 = arith.constant 0 : index
    %177 = vector.load %arg6[%c320, %c0_148] : memref<392x352xbf16, #tpu.memory_space<vmem>>, vector<8x352xbf16>
    tpu.vector_store %arg6[%c320, %c0_148], %176 {strides = array<i32>} : memref<392x352xbf16, #tpu.memory_space<vmem>>, vector<8x352xbf16>,
    %178 = vector.extract_strided_slice %165 {offsets = [0, 6], sizes = [8, 352], strides = [1, 1]} : vector<8x358xbf16> to vector<8x352xbf16>
    %c328 = arith.constant 328 : index
    %c0_149 = arith.constant 0 : index
    %179 = vector.load %arg6[%c328, %c0_149] : memref<392x352xbf16, #tpu.memory_space<vmem>>, vector<8x352xbf16>
    tpu.vector_store %arg6[%c328, %c0_149], %178 {strides = array<i32>} : memref<392x352xbf16, #tpu.memory_space<vmem>>, vector<8x352xbf16>,
    %c0_150 = arith.constant 0 : index
    %c132 = arith.constant 132 : index
    %180 = vector.load %arg5[%c0_150, %c132] : memref<8x490xf32, #tpu.memory_space<vmem>>, vector<8x358xf32>
    %181 = arith.truncf %180 : vector<8x358xf32> to vector<8x358xbf16>
    %182 = vector.extract_strided_slice %181 {offsets = [0, 0], sizes = [8, 352], strides = [1, 1]} : vector<8x358xbf16> to vector<8x352xbf16>
    %c336 = arith.constant 336 : index
    %c0_151 = arith.constant 0 : index
    %183 = vector.load %arg6[%c336, %c0_151] : memref<392x352xbf16, #tpu.memory_space<vmem>>, vector<8x352xbf16>
    tpu.vector_store %arg6[%c336, %c0_151], %182 {strides = array<i32>} : memref<392x352xbf16, #tpu.memory_space<vmem>>, vector<8x352xbf16>,
    %184 = vector.extract_strided_slice %181 {offsets = [0, 1], sizes = [8, 352], strides = [1, 1]} : vector<8x358xbf16> to vector<8x352xbf16>
    %c344 = arith.constant 344 : index
    %c0_152 = arith.constant 0 : index
    %185 = vector.load %arg6[%c344, %c0_152] : memref<392x352xbf16, #tpu.memory_space<vmem>>, vector<8x352xbf16>
    tpu.vector_store %arg6[%c344, %c0_152], %184 {strides = array<i32>} : memref<392x352xbf16, #tpu.memory_space<vmem>>, vector<8x352xbf16>,
    %186 = vector.extract_strided_slice %181 {offsets = [0, 2], sizes = [8, 352], strides = [1, 1]} : vector<8x358xbf16> to vector<8x352xbf16>
    %c352 = arith.constant 352 : index
    %c0_153 = arith.constant 0 : index
    %187 = vector.load %arg6[%c352, %c0_153] : memref<392x352xbf16, #tpu.memory_space<vmem>>, vector<8x352xbf16>
    tpu.vector_store %arg6[%c352, %c0_153], %186 {strides = array<i32>} : memref<392x352xbf16, #tpu.memory_space<vmem>>, vector<8x352xbf16>,
    %188 = vector.extract_strided_slice %181 {offsets = [0, 3], sizes = [8, 352], strides = [1, 1]} : vector<8x358xbf16> to vector<8x352xbf16>
    %c360 = arith.constant 360 : index
    %c0_154 = arith.constant 0 : index
    %189 = vector.load %arg6[%c360, %c0_154] : memref<392x352xbf16, #tpu.memory_space<vmem>>, vector<8x352xbf16>
    tpu.vector_store %arg6[%c360, %c0_154], %188 {strides = array<i32>} : memref<392x352xbf16, #tpu.memory_space<vmem>>, vector<8x352xbf16>,
    %190 = vector.extract_strided_slice %181 {offsets = [0, 4], sizes = [8, 352], strides = [1, 1]} : vector<8x358xbf16> to vector<8x352xbf16>
    %c368 = arith.constant 368 : index
    %c0_155 = arith.constant 0 : index
    %191 = vector.load %arg6[%c368, %c0_155] : memref<392x352xbf16, #tpu.memory_space<vmem>>, vector<8x352xbf16>
    tpu.vector_store %arg6[%c368, %c0_155], %190 {strides = array<i32>} : memref<392x352xbf16, #tpu.memory_space<vmem>>, vector<8x352xbf16>,
    %192 = vector.extract_strided_slice %181 {offsets = [0, 5], sizes = [8, 352], strides = [1, 1]} : vector<8x358xbf16> to vector<8x352xbf16>
    %c376 = arith.constant 376 : index
    %c0_156 = arith.constant 0 : index
    %193 = vector.load %arg6[%c376, %c0_156] : memref<392x352xbf16, #tpu.memory_space<vmem>>, vector<8x352xbf16>
    tpu.vector_store %arg6[%c376, %c0_156], %192 {strides = array<i32>} : memref<392x352xbf16, #tpu.memory_space<vmem>>, vector<8x352xbf16>,
    %194 = vector.extract_strided_slice %181 {offsets = [0, 6], sizes = [8, 352], strides = [1, 1]} : vector<8x358xbf16> to vector<8x352xbf16>
    %c384 = arith.constant 384 : index
    %c0_157 = arith.constant 0 : index
    %195 = vector.load %arg6[%c384, %c0_157] : memref<392x352xbf16, #tpu.memory_space<vmem>>, vector<8x352xbf16>
    tpu.vector_store %arg6[%c384, %c0_157], %194 {strides = array<i32>} : memref<392x352xbf16, #tpu.memory_space<vmem>>, vector<8x352xbf16>,
    %c0_158 = arith.constant 0 : index
    %c0_159 = arith.constant 0 : index
    %196 = vector.load %arg2[%c0_158, %c0_159] : memref<24x392xbf16, #tpu.memory_space<vmem>>, vector<24x392xbf16>
    %c0_160 = arith.constant 0 : index
    %c0_161 = arith.constant 0 : index
    %197 = vector.load %arg3[%c0_160, %c0_161] : memref<8x24xbf16, #tpu.memory_space<vmem>>, vector<8x24xbf16>
    %c0_162 = arith.constant 0 : index
    %c0_163 = arith.constant 0 : index
    %198 = vector.load %arg6[%c0_162, %c0_163] : memref<392x352xbf16, #tpu.memory_space<vmem>>, vector<392x352xbf16>
    %cst_164 = arith.constant dense<0.000000e+00> : vector<24x352xf32>
    %199 = tpu.matmul %196, %198, %cst_164 {dimension_numbers = #tpu.dot_dimension_numbers<[1], [0], [0], [1], [0, 0, 1, 1], [], []>} : vector<24x392xbf16>, vector<392x352xbf16>, vector<24x352xf32> -> vector<24x352xf32>
    %cst_165 = arith.constant 0.000000e+00 : f32
    %200 = vector.broadcast %cst_165 : f32 to vector<24x352xf32>
    %201 = arith.maximumf %199, %200 : vector<24x352xf32>
    %202 = arith.truncf %201 : vector<24x352xf32> to vector<24x352xbf16>
    %cst_166 = arith.constant dense<0.000000e+00> : vector<8x352xf32>
    %203 = tpu.matmul %197, %202, %cst_166 {dimension_numbers = #tpu.dot_dimension_numbers<[1], [0], [0], [1], [0, 0, 1, 1], [], []>} : vector<8x24xbf16>, vector<24x352xbf16>, vector<8x352xf32> -> vector<8x352xf32>
    %cst_167 = arith.constant 0.000000e+00 : f32
    %204 = vector.broadcast %cst_167 : f32 to vector<8x352xf32>
    %205 = arith.maximumf %203, %204 : vector<8x352xf32>
    %c0_168 = arith.constant 0 : index
    %c0_169 = arith.constant 0 : index
    %c0_170 = arith.constant 0 : index
    %206 = vector.load %arg4[%c0_168, %c0_169, %c0_170] : memref<1x8x352xf32, #tpu.memory_space<vmem>>, vector<1x8x352xf32>
    %207 = vector.shape_cast %206 : vector<1x8x352xf32> to vector<8x352xf32>
    %208 = vector.shape_cast %205 : vector<8x352xf32> to vector<1x8x352xf32>
    tpu.vector_store %arg4[%c0_168, %c0_169, %c0_170], %208 {strides = array<i32>} : memref<1x8x352xf32, #tpu.memory_space<vmem>>, vector<1x8x352xf32>,
    return
  }
  func.func @transform_0(%arg0: i32) -> (i32, i32, i32) {
    %c0_i32 = arith.constant 0 : i32
    %c0_i32_0 = arith.constant 0 : i32
    %c0_i32_1 = arith.constant 0 : i32
    return %arg0, %c0_i32, %c0_i32_0 : i32, i32, i32
  }
  func.func @transform_1(%arg0: i32) -> (i32, i32) {
    %c0_i32 = arith.constant 0 : i32
    %c0_i32_0 = arith.constant 0 : i32
    %c0_i32_1 = arith.constant 0 : i32
    return %c0_i32, %c0_i32_0 : i32, i32
  }
  func.func @transform_2(%arg0: i32) -> (i32, i32) {
    %c0_i32 = arith.constant 0 : i32
    %c0_i32_0 = arith.constant 0 : i32
    %c0_i32_1 = arith.constant 0 : i32
    return %c0_i32, %c0_i32_0 : i32, i32
  }
  func.func @transform_3(%arg0: i32) -> (i32, i32, i32) {
    %c0_i32 = arith.constant 0 : i32
    %c0_i32_0 = arith.constant 0 : i32
    %c0_i32_1 = arith.constant 0 : i32
    return %arg0, %c0_i32, %c0_i32_0 : i32, i32, i32
  }
}

</mosaic_0001>

<llo_original>
// kernel: multi_scale_conv.1
$region0: #{multi_scale_conv.1}
  #allocation0 [shape = 'u32[]', space=smem, size = 0x4, offset = 0x4, fixed_abs, tag = 'smem constant byte address 0x4 - core index']
  #allocation1 [shape = 'u32[144,128]{1,0:T(1,128)}', space=vmem, size = 0x12000, scoped, tag = 'internal scratch']
  #allocation2 [shape = 'f32[8,490]{1,0:T(8,128)}', space=vmem, size = 0x4000, scoped, tag = 'scratch operand']
  #allocation3 [shape = 'bf16[392,352]{1,0:T(8,128)(2,1)}', space=vmem, size = 0x49800, scoped, tag = 'scratch operand']
  %s0 = inlined_call_operand.vmem [shape: f32[2,4,256], index: 0, kind: input, shape index: {}]
  %s1 = inlined_call_operand.vmem [shape: bf16[24,392], index: 1, kind: input, shape index: {}]
  %s2 = inlined_call_operand.vmem [shape: bf16[8,24], index: 2, kind: input, shape index: {}]
  %s3 = inlined_call_operand.vmem [shape: f32[2,8,352], index: 3, kind: output, shape index: {}]
  %s4 = sld [smem:[#allocation0]]
  $region45: #{multi_scale_conv.1} parent=0
    _
  %s6 = ssub.s32 1, %s4
  %s7 = scalar_select 0, %s6, %s4
  loop: start=0, step=1, limit=4
  $region2: #{multi_scale_conv.1} parent=0 // loop_pre_header
    _
  $region3: #{multi_scale_conv.1} parent=0 // loop_header
    %s9 = sphi 0, %s13
    %p10 = scmp.ge.s32.totalorder %s9, 4
    %s19 = sphi 0, %s21
    %s22 = sphi 0, %s19
    %s23 = sphi 0, %s22
    %s39 = sphi 0, %s23
    %s43 = sphi 0, %s43
    %s45 = sphi 0, %s43
    %s46 = sphi 0, %s45
    %s60 = sphi 0, %s46
    %s64 = sphi 0, %s64
    %s66 = sphi 0, %s64
    %s67 = sphi 0, %s66
    %s81 = sphi 0, %s67
    %s87 = sphi 0, %s89
    %s90 = sphi 0, %s87
    %s91 = sphi 0, %s90
    %s107 = sphi 0, %s91
  $region4: #{multi_scale_conv.1} parent=0 // loop_header_branch
    %12 = sbr.rel (%p10) target = $region8
  $region5: #{multi_scale_conv.1} parent=0 // loop_body
    %s14 = ssub.s32 %s9, 1
    %s15 = ssub.s32 %s9, 2
    %s16 = sadd.s32 %s9, 1
    %s17 = ssub.s32 %s9, %s16
    %p18 = scmp.eq.s32.totalorder %s17, 0
    %s20 = sadd.s32 %s19, 1
    %s21 = scalar_select %p18, %s19, %s20
    %p24 = pneg %p18
    %p25 = scmp.eq.s32.totalorder %s9, 1
    %p26 = por %p24, %p25
    %p27 = scmp.ne.s32.totalorder %s19, %s22
    %p28 = scmp.eq.s32.totalorder %s9, 0
    %p29 = por %p27, %p28
    %p30 = scmp.ne.s32.totalorder %s19, %s22
    %p31 = scmp.eq.s32.totalorder %s14, 1
    %p32 = por %p30, %p31
    %p33 = scmp.ne.s32.totalorder %s22, %s23
    %p34 = scmp.eq.s32.totalorder %s14, 0
    %p35 = por %p33, %p34
    %p36 = scmp.ne.s32.totalorder %s22, %s23
    %p37 = scmp.eq.s32.totalorder %s15, 1
    %p38 = por %p36, %p37
    %p40 = scmp.ne.s32.totalorder %s23, %s39
    %p41 = scmp.eq.s32.totalorder %s15, 0
    %p42 = por %p40, %p41
    %s44 = sadd.s32 %s43, 1
    %p47 = scmp.eq.s32.totalorder %s9, 1
    %p48 = scmp.ne.s32.totalorder %s43, %s45
    %p49 = scmp.eq.s32.totalorder %s9, 0
    %p50 = por %p48, %p49
    %p51 = scmp.ne.s32.totalorder %s43, %s45
    %p52 = scmp.eq.s32.totalorder %s14, 1
    %p53 = por %p51, %p52
    %p54 = scmp.ne.s32.totalorder %s45, %s46
    %p55 = scmp.eq.s32.totalorder %s14, 0
    %p56 = por %p54, %p55
    %p57 = scmp.ne.s32.totalorder %s45, %s46
    %p58 = scmp.eq.s32.totalorder %s15, 1
    %p59 = por %p57, %p58
    %p61 = scmp.ne.s32.totalorder %s46, %s60
    %p62 = scmp.eq.s32.totalorder %s15, 0
    %p63 = por %p61, %p62
    %s65 = sadd.s32 %s64, 1
    %p68 = scmp.eq.s32.totalorder %s9, 1
    %p69 = scmp.ne.s32.totalorder %s64, %s66
    %p70 = scmp.eq.s32.totalorder %s9, 0
    %p71 = por %p69, %p70
    %p72 = scmp.ne.s32.totalorder %s64, %s66
    %p73 = scmp.eq.s32.totalorder %s14, 1
    %p74 = por %p72, %p73
    %p75 = scmp.ne.s32.totalorder %s66, %s67
    %p76 = scmp.eq.s32.totalorder %s14, 0
    %p77 = por %p75, %p76
    %p78 = scmp.ne.s32.totalorder %s66, %s67
    %p79 = scmp.eq.s32.totalorder %s15, 1
    %p80 = por %p78, %p79
    %p82 = scmp.ne.s32.totalorder %s67, %s81
    %p83 = scmp.eq.s32.totalorder %s15, 0
    %p84 = por %p82, %p83
    %s85 = ssub.s32 %s9, %s16
    %p86 = scmp.eq.s32.totalorder %s85, 0
    %s88 = sadd.s32 %s87, 1
    %s89 = scalar_select %p86, %s87, %s88
    %p92 = pneg %p86
    %p93 = scmp.eq.s32.totalorder %s9, 1
    %p94 = por %p92, %p93
    %p95 = scmp.ne.s32.totalorder %s87, %s90
    %p96 = scmp.eq.s32.totalorder %s9, 0
    %p97 = por %p95, %p96
    %p98 = scmp.ne.s32.totalorder %s87, %s90
    %p99 = scmp.eq.s32.totalorder %s14, 1
    %p100 = por %p98, %p99
    %p101 = scmp.ne.s32.totalorder %s90, %s91
    %p102 = scmp.eq.s32.totalorder %s14, 0
    %p103 = por %p101, %p102
    %p104 = scmp.ne.s32.totalorder %s90, %s91
    %p105 = scmp.eq.s32.totalorder %s15, 1
    %p106 = por %p104, %p105
    %p108 = scmp.ne.s32.totalorder %s91, %s107
    %p109 = scmp.eq.s32.totalorder %s15, 0
    %p110 = por %p108, %p109
    %p111 = scmp.le.s32.totalorder 1, %s9
    %p112 = scmp.lt.s32.totalorder %s9, 3
    %p113 = pnand %p111, %p112
    %p114 = pneg %p113
    // Predicated region
    $region9: #{multi_scale_conv.1} parent=5 // pred_check
      _
    $region10: #{multi_scale_conv.1} parent=5 // pred_check_branch
      %116 = sbr.rel (%p113) target = $region12
    $region11: #{multi_scale_conv.1} parent=5 // pred_region
      %s117 = ssub.s32 %s9, 1
      // Predicated region
      $region13: #{multi_scale_conv.1} parent=11 // pred_check
        %p118 = pneg %p56
      $region14: #{multi_scale_conv.1} parent=11 // pred_check_branch
        %120 = sbr.rel (%p118) target = $region16
      $region15: #{multi_scale_conv.1} parent=11 // pred_region
        _
      $region16: #{multi_scale_conv.1} parent=11 // pred_fallthru
        _
      // Predicated region
      $region17: #{multi_scale_conv.1} parent=11 // pred_check
        %p121 = pneg %p77
      $region18: #{multi_scale_conv.1} parent=11 // pred_check_branch
        %123 = sbr.rel (%p121) target = $region20
      $region19: #{multi_scale_conv.1} parent=11 // pred_region
        _
      $region20: #{multi_scale_conv.1} parent=11 // pred_fallthru
        _
    $region12: #{multi_scale_conv.1} parent=5 // pred_fallthru
      _
    %p124 = scmp.lt.s32.totalorder %s9, 2
    // Predicated region
    $region21: #{multi_scale_conv.1} parent=5 // pred_check
      %p125 = pneg %p124
    $region22: #{multi_scale_conv.1} parent=5 // pred_check_branch
      %127 = sbr.rel (%p125) target = $region24
    $region23: #{multi_scale_conv.1} parent=5 // pred_region
      // Predicated region
      $region25: #{multi_scale_conv.1} parent=23 // pred_check
        %p128 = pneg %p29
      $region26: #{multi_scale_conv.1} parent=23 // pred_check_branch
        %130 = sbr.rel (%p128) target = $region28
      $region27: #{multi_scale_conv.1} parent=23 // pred_region
        %p131 = scmp.lt.s32.totalorder %s9, 1
        %s132 = scalar_select %p131, %s9, 1
        %s133 = smul.addr %s132, 2
        %s134 = smul.addr %s133, 4
        %s135 = scalar_lea.vmem %s0, %s134
      $region28: #{multi_scale_conv.1} parent=23 // pred_fallthru
        _
    $region24: #{multi_scale_conv.1} parent=5 // pred_fallthru
      _
    %p136 = scmp.le.s32.totalorder 1, %s9
    %p137 = scmp.lt.s32.totalorder %s9, 3
    %p138 = pnand %p136, %p137
    %p139 = pneg %p138
    // Predicated region
    $region29: #{multi_scale_conv.1} parent=5 // pred_check
      _
    $region30: #{multi_scale_conv.1} parent=5 // pred_check_branch
      %141 = sbr.rel (%p138) target = $region32
    $region31: #{multi_scale_conv.1} parent=5 // pred_region
      %s142 = ssub.s32 %s9, 1
      %p143 = scmp.lt.s32.totalorder %s14, 1
      %s144 = scalar_select %p143, %s14, 1
      %s145 = smul.addr %s144, 2
      %s146 = smul.addr %s145, 4
      %s147 = scalar_lea.vmem %s0, %s146
      %p148 = pneg %p35
      %p149 = pneg %p32
      %p150 = pneg %p56
      %p151 = pneg %p53
      %p152 = pneg %p77
      %p153 = pneg %p74
      %p154 = pneg %p103
      %p155 = pneg %p100
      %p156 = scmp.lt.s32.totalorder %s14, 1
      %s157 = scalar_select %p156, %s14, 1
      %s158 = smul.addr %s157, 3
      %s159 = smul.addr %s158, 8
      %s160 = scalar_lea.vmem %s3, %s159
      %p161 = scmp.lt.s32.totalorder %s14, 1
      %s162 = scalar_select %p161, %s14, 1
      %s163 = smul.addr %s162, 2
      %s164 = smul.addr %s163, 4
      %s165 = scalar_lea.vmem %s0, %s164
      %p166 = scmp.lt.s32.totalorder %s14, 1
      %s167 = scalar_select %p166, %s14, 1
      %s168 = smul.addr %s167, 3
      %s169 = smul.addr %s168, 8
      %s170 = scalar_lea.vmem %s3, %s169
      %172 = vst [vmem:[#allocation2] sm:$0xf0] 0.0
      %173 = vst [vmem:[#allocation2 + $0x8] sm:$0xf0] 0.0
      %174 = vst [vmem:[#allocation2 + $0x10] sm:$0xf0] 0.0
      %vm175 = vcmask 867332
      %176 = vst.msk [vmem:[#allocation2 + $0x18] sm:$0xf0] %vm175, 0.0
      %vm177 = vcmask 564224
      %178 = vst.msk [vmem:[#allocation2] sm:$0xff] %vm177, 0.0
      %vm179 = vcmask 867576
      %180 = vst.msk [vmem:[#allocation2 + $0x18] sm:$0xff] %vm179, 0.0
      %vm181 = vcmask 745128
      %182 = vst.msk [vmem:[#allocation2] sm:$0xff] %vm181, 0.0
      %vm183 = vcmask 925528
      %184 = vst.msk [vmem:[#allocation2] sm:$0xff] %vm183, 0.0
      %vm185 = vcmask 56328
      %186 = vst.msk [vmem:[#allocation2 + $0x8] sm:$0xff] %vm185, 0.0
      %vm187 = vcmask 236728
      %188 = vst.msk [vmem:[#allocation2 + $0x8] sm:$0xff] %vm187, 0.0
      %vm189 = vcmask 417128
      %190 = vst.msk [vmem:[#allocation2 + $0x8] sm:$0xff] %vm189, 0.0
      %vm191 = vcmask 597528
      %192 = vst.msk [vmem:[#allocation2 + $0x8] sm:$0xff] %vm191, 0.0
      %vm193 = vcmask 777928
      %194 = vst.msk [vmem:[#allocation2 + $0x8] sm:$0xff] %vm193, 0.0
      %vm195 = vcmask 958328
      %196 = vst.msk [vmem:[#allocation2 + $0x8] sm:$0xff] %vm195, 0.0
      %vm197 = vcmask 89128
      %198 = vst.msk [vmem:[#allocation2 + $0x10] sm:$0xff] %vm197, 0.0
      %vm199 = vcmask 269528
      %200 = vst.msk [vmem:[#allocation2 + $0x10] sm:$0xff] %vm199, 0.0
      %vm201 = vcmask 449928
      %202 = vst.msk [vmem:[#allocation2 + $0x10] sm:$0xff] %vm201, 0.0
      %vm203 = vcmask 630328
      %204 = vst.msk [vmem:[#allocation2 + $0x10] sm:$0xff] %vm203, 0.0
      %vm205 = vcmask 810728
      %206 = vst.msk [vmem:[#allocation2 + $0x10] sm:$0xff] %vm205, 0.0
      %vm207 = vcmask 991128
      %208 = vst.msk [vmem:[#allocation2 + $0x10] sm:$0xff] %vm207, 0.0
      %vm209 = vcmask 121928
      %210 = vst.msk [vmem:[#allocation2 + $0x18] sm:$0xff] %vm209, 0.0
      %v211 = vld [vmem:[%s165] sm:$0xf]
      %213 = vrot.lane.b32.xlu0 %v211, 69
      %v214 = vpop.permute.xlu0 %213
      %vm216 = vcmask 691752
      %217 = vst.msk [vmem:[#allocation2] sm:$0xf] %vm216, %v214
      %v218 = vld [vmem:[%s165] sm:$0xf]
      %220 = vrot.lane.b32.xlu0 %v218, 75
      %v221 = vpop.permute.xlu0 %220
      %vm223 = vcmask 872152
      %224 = vst.msk [vmem:[#allocation2] sm:$0xf] %vm223, %v221
      %v225 = vld [vmem:[%s165] sm:$0xf]
      %227 = vrot.lane.b32.xlu0 %v225, 81
      %v228 = vpop.permute.xlu0 %227
      %vm230 = vcmask 1044360
      %231 = vst.msk [vmem:[#allocation2] sm:$0xf] %vm230, %v228
      %vm232 = vcmask 3072
      %233 = vst.msk [vmem:[#allocation2 + $0x8] sm:$0xf] %vm232, %v228
      %v234 = vld [vmem:[%s165] sm:$0xf]
      %236 = vrot.lane.b32.xlu0 %v234, 87
      %v237 = vpop.permute.xlu0 %236
      %vm239 = vcmask 183352
      %240 = vst.msk [vmem:[#allocation2 + $0x8] sm:$0xf] %vm239, %v237
      %v241 = vld [vmem:[%s165] sm:$0xf]
      %243 = vrot.lane.b32.xlu0 %v241, 93
      %v244 = vpop.permute.xlu0 %243
      %vm246 = vcmask 363752
      %247 = vst.msk [vmem:[#allocation2 + $0x8] sm:$0xf] %vm246, %v244
      %v248 = vld [vmem:[%s165] sm:$0xf]
      %250 = vrot.lane.b32.xlu0 %v248, 99
      %v251 = vpop.permute.xlu0 %250
      %vm253 = vcmask 544152
      %254 = vst.msk [vmem:[#allocation2 + $0x8] sm:$0xf] %vm253, %v251
      %v255 = vld [vmem:[%s165] sm:$0xf]
      %257 = vrot.lane.b32.xlu0 %v255, 105
      %v258 = vpop.permute.xlu0 %257
      %vm260 = vcmask 724552
      %261 = vst.msk [vmem:[#allocation2 + $0x8] sm:$0xf] %vm260, %v258
      %v262 = vld [vmem:[%s165] sm:$0xf]
      %264 = vrot.lane.b32.xlu0 %v262, 111
      %v265 = vpop.permute.xlu0 %264
      %vm267 = vcmask 904952
      %268 = vst.msk [vmem:[#allocation2 + $0x8] sm:$0xf] %vm267, %v265
      %v269 = vld [vmem:[%s165 + $0x4] sm:$0xf]
      %271 = vrot.lane.b32.xlu0 %v269, 117
      %v272 = vpop.permute.xlu0 %271
      %vm274 = vcmask 1044392
      %275 = vst.msk [vmem:[#allocation2 + $0x8] sm:$0xf] %vm274, %v272
      %vm276 = vcmask 35840
      %277 = vst.msk [vmem:[#allocation2 + $0x10] sm:$0xf] %vm276, %v272
      %v278 = vld [vmem:[%s165 + $0x4] sm:$0xf]
      %280 = vrot.lane.b32.xlu0 %v278, 123
      %v281 = vpop.permute.xlu0 %280
      %vm283 = vcmask 216152
      %284 = vst.msk [vmem:[#allocation2 + $0x10] sm:$0xf] %vm283, %v281
      %v285 = vld [vmem:[%s165 + $0x4] sm:$0xf]
      %287 = vrot.lane.b32.xlu0 %v285, 1
      %v288 = vpop.permute.xlu0 %287
      %vm290 = vcmask 396552
      %291 = vst.msk [vmem:[#allocation2 + $0x10] sm:$0xf] %vm290, %v288
      %v292 = vld [vmem:[%s165 + $0x4] sm:$0xf]
      %294 = vrot.lane.b32.xlu0 %v292, 7
      %v295 = vpop.permute.xlu0 %294
      %vm297 = vcmask 576952
      %298 = vst.msk [vmem:[#allocation2 + $0x10] sm:$0xf] %vm297, %v295
      %v299 = vld [vmem:[%s165 + $0x4] sm:$0xf]
      %301 = vrot.lane.b32.xlu0 %v299, 13
      %v302 = vpop.permute.xlu0 %301
      %vm304 = vcmask 757352
      %305 = vst.msk [vmem:[#allocation2 + $0x10] sm:$0xf] %vm304, %v302
      %v306 = vld [vmem:[%s165 + $0x4] sm:$0xf]
      %308 = vrot.lane.b32.xlu0 %v306, 19
      %v309 = vpop.permute.xlu0 %308
      %vm311 = vcmask 937752
      %312 = vst.msk [vmem:[#allocation2 + $0x10] sm:$0xf] %vm311, %v309
      %v313 = vld [vmem:[%s165 + $0x4] sm:$0xf]
      %315 = vrot.lane.b32.xlu0 %v313, 25
      %v316 = vpop.permute.xlu0 %315
      %vm318 = vcmask 1044424
      %319 = vst.msk [vmem:[#allocation2 + $0x10] sm:$0xf] %vm318, %v316
      %vm320 = vcmask 68608
      %321 = vst.msk [vmem:[#allocation2 + $0x18] sm:$0xf] %vm320, %v316
      %v322 = vld [vmem:[%s165 + $0x4] sm:$0xf]
      %324 = vrot.lane.b32.xlu0 %v322, 31
      %v325 = vpop.permute.xlu0 %324
      %vm327 = vcmask 248952
      %328 = vst.msk [vmem:[#allocation2 + $0x18] sm:$0xf] %vm327, %v325
      %v329 = vld [vmem:[#allocation2] sm:$0xff]
      %v330 = vld [vmem:[#allocation2 + $0x8] sm:$0xff]
      %v331 = vld [vmem:[#allocation2 + $0x10] sm:$0xff]
      %v332 = vpack.c.bf16 %v329, %v329
      %v333 = vpack.c.bf16 %v330, %v330
      %v334 = vpack.c.bf16 %v331, %v331
      %v338 = vunpack.c.l.b16 %v332
      %v339 = vunpack.c.l.b16 %v333
      %v340 = vunpack.c.l.b16 %v334
      %v341 = vpack.c.b16 %v339, %v338
      %v342 = vpack.c.b16 %v340, %v340
      %345 = vst [vmem:[#allocation3] sm:$0xff] %v341
      %vm346 = vcmask 781312
      %347 = vst.msk [vmem:[#allocation3 + $0x8] sm:$0xf] %vm346, %v342
      %348 = vrot.lane.b32.xlu0 %v341, 127
      %v349 = vpop.permute.xlu0 %348
      %350 = vrot.lane.b32.xlu0 %v342, 127
      %v351 = vpop.permute.xlu0 %350
      %v352 = vrot.slane %v349, 4
      %v353 = vrot.slane %v351, 4
      %vm354 = vcmask 1043456
      %v355 = vsel %vm354, %v352, %v353
      %vm356 = vcmask 1039360
      %v357 = vsel %vm356, %v349, %v355
      %360 = vst [vmem:[#allocation3 + $0xc] sm:$0xff] %v357
      %361 = vst.msk [vmem:[#allocation3 + $0x14] sm:$0xf] %vm346, %v351
      %362 = vrot.lane.b32.xlu0 %v341, 126
      %v363 = vpop.permute.xlu0 %362
      %364 = vrot.lane.b32.xlu0 %v342, 126
      %v365 = vpop.permute.xlu0 %364
      %v366 = vrot.slane %v363, 4
      %v367 = vrot.slane %v365, 4
      %v368 = vsel %vm354, %v366, %v367
      %vm369 = vcmask 1031168
      %v370 = vsel %vm369, %v363, %v368
      %373 = vst [vmem:[#allocation3 + $0x18] sm:$0xff] %v370
      %374 = vst.msk [vmem:[#allocation3 + $0x20] sm:$0xf] %vm346, %v365
      %375 = vrot.lane.b32.xlu0 %v341, 125
      %v376 = vpop.permute.xlu0 %375
      %377 = vrot.lane.b32.xlu0 %v342, 125
      %v378 = vpop.permute.xlu0 %377
      %v379 = vrot.slane %v376, 4
      %v380 = vrot.slane %v378, 4
      %v381 = vsel %vm354, %v379, %v380
      %vm382 = vcmask 1022976
      %v383 = vsel %vm382, %v376, %v381
      %386 = vst [vmem:[#allocation3 + $0x24] sm:$0xff] %v383
      %387 = vst.msk [vmem:[#allocation3 + $0x2c] sm:$0xf] %vm346, %v378
      %388 = vrot.lane.b32.xlu0 %v341, 124
      %v389 = vpop.permute.xlu0 %388
      %390 = vrot.lane.b32.xlu0 %v342, 124
      %v391 = vpop.permute.xlu0 %390
      %v392 = vrot.slane %v389, 4
      %v393 = vrot.slane %v391, 4
      %v394 = vsel %vm354, %v392, %v393
      %vm395 = vcmask 1014784
      %v396 = vsel %vm395, %v389, %v394
      %399 = vst [vmem:[#allocation3 + $0x30] sm:$0xff] %v396
      %400 = vst.msk [vmem:[#allocation3 + $0x38] sm:$0xf] %vm346, %v391
      %401 = vrot.lane.b32.xlu0 %v341, 123
      %v402 = vpop.permute.xlu0 %401
      %403 = vrot.lane.b32.xlu0 %v342, 123
      %v404 = vpop.permute.xlu0 %403
      %v405 = vrot.slane %v402, 4
      %v406 = vrot.slane %v404, 4
      %v407 = vsel %vm354, %v405, %v406
      %vm408 = vcmask 1006592
      %v409 = vsel %vm408, %v402, %v407
      %412 = vst [vmem:[#allocation3 + $0x3c] sm:$0xff] %v409
      %413 = vst.msk [vmem:[#allocation3 + $0x44] sm:$0xf] %vm346, %v404
      %414 = vrot.lane.b32.xlu0 %v341, 122
      %v415 = vpop.permute.xlu0 %414
      %416 = vrot.lane.b32.xlu0 %v342, 122
      %v417 = vpop.permute.xlu0 %416
      %v418 = vrot.slane %v415, 4
      %v419 = vrot.slane %v417, 4
      %v420 = vsel %vm354, %v418, %v419
      %vm421 = vcmask 998400
      %v422 = vsel %vm421, %v415, %v420
      %425 = vst [vmem:[#allocation3 + $0x48] sm:$0xff] %v422
      %426 = vst.msk [vmem:[#allocation3 + $0x50] sm:$0xf] %vm346, %v417
      %v427 = vld [vmem:[#allocation2] sm:$0xff]
      %v428 = vld [vmem:[#allocation2 + $0x8] sm:$0xff]
      %v429 = vld [vmem:[#allocation2 + $0x10] sm:$0xff]
      %v430 = vpack.c.bf16 %v427, %v427
      %v431 = vpack.c.bf16 %v428, %v428
      %v432 = vpack.c.bf16 %v429, %v429
      %v436 = vunpack.c.l.b16 %v430
      %v437 = vunpack.c.l.b16 %v431
      %v438 = vunpack.c.l.b16 %v432
      %v439 = vpack.c.b16 %v437, %v436
      %v440 = vpack.c.b16 %v438, %v438
      %441 = vrot.lane.b32.xlu0 %v439, 106
      %v442 = vpop.permute.xlu0 %441
      %443 = vrot.lane.b32.xlu0 %v440, 106
      %v444 = vpop.permute.xlu0 %443
      %v445 = vrot.slane %v442, 4
      %v446 = vrot.slane %v444, 4
      %v447 = vsel %vm354, %v445, %v446
      %vm448 = vcmask 867328
      %v449 = vsel %vm448, %v442, %v447
      %452 = vst [vmem:[#allocation3 + $0x54] sm:$0xff] %v449
      %453 = vst.msk [vmem:[#allocation3 + $0x5c] sm:$0xf] %vm346, %v444
      %454 = vrot.lane.b32.xlu0 %v439, 105
      %v455 = vpop.permute.xlu0 %454
      %456 = vrot.lane.b32.xlu0 %v440, 105
      %v457 = vpop.permute.xlu0 %456
      %v458 = vrot.slane %v455, 4
      %v459 = vrot.slane %v457, 4
      %v460 = vsel %vm354, %v458, %v459
      %vm461 = vcmask 859136
      %v462 = vsel %vm461, %v455, %v460
      %465 = vst [vmem:[#allocation3 + $0x60] sm:$0xff] %v462
      %466 = vst.msk [vmem:[#allocation3 + $0x68] sm:$0xf] %vm346, %v457
      %467 = vrot.lane.b32.xlu0 %v439, 104
      %v468 = vpop.permute.xlu0 %467
      %469 = vrot.lane.b32.xlu0 %v440, 104
      %v470 = vpop.permute.xlu0 %469
      %v471 = vrot.slane %v468, 4
      %v472 = vrot.slane %v470, 4
      %v473 = vsel %vm354, %v471, %v472
      %vm474 = vcmask 850944
      %v475 = vsel %vm474, %v468, %v473
      %478 = vst [vmem:[#allocation3 + $0x6c] sm:$0xff] %v475
      %479 = vst.msk [vmem:[#allocation3 + $0x74] sm:$0xf] %vm346, %v470
      %480 = vrot.lane.b32.xlu0 %v439, 103
      %v481 = vpop.permute.xlu0 %480
      %482 = vrot.lane.b32.xlu0 %v440, 103
      %v483 = vpop.permute.xlu0 %482
      %v484 = vrot.slane %v481, 4
      %v485 = vrot.slane %v483, 4
      %v486 = vsel %vm354, %v484, %v485
      %vm487 = vcmask 842752
      %v488 = vsel %vm487, %v481, %v486
      %491 = vst [vmem:[#allocation3 + $0x78] sm:$0xff] %v488
      %492 = vst.msk [vmem:[#allocation3 + $0x80] sm:$0xf] %vm346, %v483
      %493 = vrot.lane.b32.xlu0 %v439, 102
      %v494 = vpop.permute.xlu0 %493
      %495 = vrot.lane.b32.xlu0 %v440, 102
      %v496 = vpop.permute.xlu0 %495
      %v497 = vrot.slane %v494, 4
      %v498 = vrot.slane %v496, 4
      %v499 = vsel %vm354, %v497, %v498
      %vm500 = vcmask 834560
      %v501 = vsel %vm500, %v494, %v499
      %504 = vst [vmem:[#allocation3 + $0x84] sm:$0xff] %v501
      %505 = vst.msk [vmem:[#allocation3 + $0x8c] sm:$0xf] %vm346, %v496
      %506 = vrot.lane.b32.xlu0 %v439, 101
      %v507 = vpop.permute.xlu0 %506
      %508 = vrot.lane.b32.xlu0 %v440, 101
      %v509 = vpop.permute.xlu0 %508
      %v510 = vrot.slane %v507, 4
      %v511 = vrot.slane %v509, 4
      %v512 = vsel %vm354, %v510, %v511
      %vm513 = vcmask 826368
      %v514 = vsel %vm513, %v507, %v512
      %517 = vst [vmem:[#allocation3 + $0x90] sm:$0xff] %v514
      %518 = vst.msk [vmem:[#allocation3 + $0x98] sm:$0xf] %vm346, %v509
      %519 = vrot.lane.b32.xlu0 %v439, 100
      %v520 = vpop.permute.xlu0 %519
      %521 = vrot.lane.b32.xlu0 %v440, 100
      %v522 = vpop.permute.xlu0 %521
      %v523 = vrot.slane %v520, 4
      %v524 = vrot.slane %v522, 4
      %v525 = vsel %vm354, %v523, %v524
      %vm526 = vcmask 818176
      %v527 = vsel %vm526, %v520, %v525
      %530 = vst [vmem:[#allocation3 + $0x9c] sm:$0xff] %v527
      %531 = vst.msk [vmem:[#allocation3 + $0xa4] sm:$0xf] %vm346, %v522
      %v532 = vld [vmem:[#allocation2] sm:$0xff]
      %v533 = vld [vmem:[#allocation2 + $0x8] sm:$0xff]
      %v534 = vld [vmem:[#allocation2 + $0x10] sm:$0xff]
      %v535 = vld [vmem:[#allocation2 + $0x18] sm:$0xff]
      %v536 = vpack.c.bf16 %v532, %v532
      %v537 = vpack.c.bf16 %v533, %v533
      %v538 = vpack.c.bf16 %v534, %v534
      %v539 = vpack.c.bf16 %v535, %v535
      %v544 = vunpack.c.l.b16 %v536
      %v545 = vunpack.c.l.b16 %v537
      %v546 = vunpack.c.l.b16 %v538
      %v547 = vunpack.c.l.b16 %v539
      %v548 = vpack.c.b16 %v545, %v544
      %v549 = vpack.c.b16 %v547, %v546
      %550 = vrot.lane.b32.xlu0 %v548, 84
      %v551 = vpop.permute.xlu0 %550
      %552 = vrot.lane.b32.xlu0 %v549, 84
      %v553 = vpop.permute.xlu0 %552
      %v554 = vrot.slane %v551, 4
      %v555 = vrot.slane %v553, 4
      %v556 = vsel %vm354, %v554, %v555
      %vm557 = vcmask 687104
      %v558 = vsel %vm557, %v551, %v556
      %v559 = vsel %vm557, %v553, %v555
      %562 = vst [vmem:[#allocation3 + $0xa8] sm:$0xff] %v558
      %563 = vst.msk [vmem:[#allocation3 + $0xb0] sm:$0xf] %vm346, %v559
      %564 = vrot.lane.b32.xlu0 %v548, 83
      %v565 = vpop.permute.xlu0 %564
      %566 = vrot.lane.b32.xlu0 %v549, 83
      %v567 = vpop.permute.xlu0 %566
      %v568 = vrot.slane %v565, 4
      %v569 = vrot.slane %v567, 4
      %v570 = vsel %vm354, %v568, %v569
      %vm571 = vcmask 678912
      %v572 = vsel %vm571, %v565, %v570
      %v573 = vsel %vm571, %v567, %v569
      %576 = vst [vmem:[#allocation3 + $0xb4] sm:$0xff] %v572
      %577 = vst.msk [vmem:[#allocation3 + $0xbc] sm:$0xf] %vm346, %v573
      %578 = vrot.lane.b32.xlu0 %v548, 82
      %v579 = vpop.permute.xlu0 %578
      %580 = vrot.lane.b32.xlu0 %v549, 82
      %v581 = vpop.permute.xlu0 %580
      %v582 = vrot.slane %v579, 4
      %v583 = vrot.slane %v581, 4
      %v584 = vsel %vm354, %v582, %v583
      %vm585 = vcmask 670720
      %v586 = vsel %vm585, %v579, %v584
      %v587 = vsel %vm585, %v581, %v583
      %590 = vst [vmem:[#allocation3 + $0xc0] sm:$0xff] %v586
      %591 = vst.msk [vmem:[#allocation3 + $0xc8] sm:$0xf] %vm346, %v587
      %592 = vrot.lane.b32.xlu0 %v548, 81
      %v593 = vpop.permute.xlu0 %592
      %594 = vrot.lane.b32.xlu0 %v549, 81
      %v595 = vpop.permute.xlu0 %594
      %v596 = vrot.slane %v593, 4
      %v597 = vrot.slane %v595, 4
      %v598 = vsel %vm354, %v596, %v597
      %vm599 = vcmask 662528
      %v600 = vsel %vm599, %v593, %v598
      %v601 = vsel %vm599, %v595, %v597
      %604 = vst [vmem:[#allocation3 + $0xcc] sm:$0xff] %v600
      %605 = vst.msk [vmem:[#allocation3 + $0xd4] sm:$0xf] %vm346, %v601
      %606 = vrot.lane.b32.xlu0 %v548, 80
      %v607 = vpop.permute.xlu0 %606
      %608 = vrot.lane.b32.xlu0 %v549, 80
      %v609 = vpop.permute.xlu0 %608
      %v610 = vrot.slane %v607, 4
      %v611 = vrot.slane %v609, 4
      %v612 = vsel %vm354, %v610, %v611
      %vm613 = vcmask 654336
      %v614 = vsel %vm613, %v607, %v612
      %v615 = vsel %vm613, %v609, %v611
      %618 = vst [vmem:[#allocation3 + $0xd8] sm:$0xff] %v614
      %619 = vst.msk [vmem:[#allocation3 + $0xe0] sm:$0xf] %vm346, %v615
      %620 = vrot.lane.b32.xlu0 %v548, 79
      %v621 = vpop.permute.xlu0 %620
      %622 = vrot.lane.b32.xlu0 %v549, 79
      %v623 = vpop.permute.xlu0 %622
      %v624 = vrot.slane %v621, 4
      %v625 = vrot.slane %v623, 4
      %v626 = vsel %vm354, %v624, %v625
      %vm627 = vcmask 646144
      %v628 = vsel %vm627, %v621, %v626
      %v629 = vsel %vm627, %v623, %v625
      %632 = vst [vmem:[#allocation3 + $0xe4] sm:$0xff] %v628
      %633 = vst.msk [vmem:[#allocation3 + $0xec] sm:$0xf] %vm346, %v629
      %634 = vrot.lane.b32.xlu0 %v548, 78
      %v635 = vpop.permute.xlu0 %634
      %636 = vrot.lane.b32.xlu0 %v549, 78
      %v637 = vpop.permute.xlu0 %636
      %v638 = vrot.slane %v635, 4
      %v639 = vrot.slane %v637, 4
      %v640 = vsel %vm354, %v638, %v639
      %vm641 = vcmask 637952
      %v642 = vsel %vm641, %v635, %v640
      %v643 = vsel %vm641, %v637, %v639
      %646 = vst [vmem:[#allocation3 + $0xf0] sm:$0xff] %v642
      %647 = vst.msk [vmem:[#allocation3 + $0xf8] sm:$0xf] %vm346, %v643
      %v648 = vld [vmem:[#allocation2] sm:$0xff]
      %v649 = vld [vmem:[#allocation2 + $0x8] sm:$0xff]
      %v650 = vld [vmem:[#allocation2 + $0x10] sm:$0xff]
      %v651 = vld [vmem:[#allocation2 + $0x18] sm:$0xff]
      %v652 = vpack.c.bf16 %v648, %v648
      %v653 = vpack.c.bf16 %v649, %v649
      %v654 = vpack.c.bf16 %v650, %v650
      %v655 = vpack.c.bf16 %v651, %v651
      %v660 = vunpack.c.l.b16 %v652
      %v661 = vunpack.c.l.b16 %v653
      %v662 = vunpack.c.l.b16 %v654
      %v663 = vunpack.c.l.b16 %v655
      %v664 = vpack.c.b16 %v661, %v660
      %v665 = vpack.c.b16 %v663, %v662
      %666 = vrot.lane.b32.xlu0 %v664, 62
      %v667 = vpop.permute.xlu0 %666
      %668 = vrot.lane.b32.xlu0 %v665, 62
      %v669 = vpop.permute.xlu0 %668
      %v670 = vrot.slane %v667, 4
      %v671 = vrot.slane %v669, 4
      %v672 = vsel %vm354, %v670, %v671
      %vm673 = vcmask 506880
      %v674 = vsel %vm673, %v667, %v672
      %v675 = vsel %vm673, %v669, %v671
      %678 = vst [vmem:[#allocation3 + $0xfc] sm:$0xff] %v674
      %679 = vst.msk [vmem:[#allocation3 + $0x104] sm:$0xf] %vm346, %v675
      %680 = vrot.lane.b32.xlu0 %v664, 61
      %v681 = vpop.permute.xlu0 %680
      %682 = vrot.lane.b32.xlu0 %v665, 61
      %v683 = vpop.permute.xlu0 %682
      %v684 = vrot.slane %v681, 4
      %v685 = vrot.slane %v683, 4
      %v686 = vsel %vm354, %v684, %v685
      %vm687 = vcmask 498688
      %v688 = vsel %vm687, %v681, %v686
      %v689 = vsel %vm687, %v683, %v685
      %692 = vst [vmem:[#allocation3 + $0x108] sm:$0xff] %v688
      %693 = vst.msk [vmem:[#allocation3 + $0x110] sm:$0xf] %vm346, %v689
      %694 = vrot.lane.b32.xlu0 %v664, 60
      %v695 = vpop.permute.xlu0 %694
      %696 = vrot.lane.b32.xlu0 %v665, 60
      %v697 = vpop.permute.xlu0 %696
      %v698 = vrot.slane %v695, 4
      %v699 = vrot.slane %v697, 4
      %v700 = vsel %vm354, %v698, %v699
      %vm701 = vcmask 490496
      %v702 = vsel %vm701, %v695, %v700
      %v703 = vsel %vm701, %v697, %v699
      %706 = vst [vmem:[#allocation3 + $0x114] sm:$0xff] %v702
      %707 = vst.msk [vmem:[#allocation3 + $0x11c] sm:$0xf] %vm346, %v703
      %708 = vrot.lane.b32.xlu0 %v664, 59
      %v709 = vpop.permute.xlu0 %708
      %710 = vrot.lane.b32.xlu0 %v665, 59
      %v711 = vpop.permute.xlu0 %710
      %v712 = vrot.slane %v709, 4
      %v713 = vrot.slane %v711, 4
      %v714 = vsel %vm354, %v712, %v713
      %vm715 = vcmask 482304
      %v716 = vsel %vm715, %v709, %v714
      %v717 = vsel %vm715, %v711, %v713
      %720 = vst [vmem:[#allocation3 + $0x120] sm:$0xff] %v716
      %721 = vst.msk [vmem:[#allocation3 + $0x128] sm:$0xf] %vm346, %v717
      %722 = vrot.lane.b32.xlu0 %v664, 58
      %v723 = vpop.permute.xlu0 %722
      %724 = vrot.lane.b32.xlu0 %v665, 58
      %v725 = vpop.permute.xlu0 %724
      %v726 = vrot.slane %v723, 4
      %v727 = vrot.slane %v725, 4
      %v728 = vsel %vm354, %v726, %v727
      %vm729 = vcmask 474112
      %v730 = vsel %vm729, %v723, %v728
      %v731 = vsel %vm729, %v725, %v727
      %734 = vst [vmem:[#allocation3 + $0x12c] sm:$0xff] %v730
      %735 = vst.msk [vmem:[#allocation3 + $0x134] sm:$0xf] %vm346, %v731
      %736 = vrot.lane.b32.xlu0 %v664, 57
      %v737 = vpop.permute.xlu0 %736
      %738 = vrot.lane.b32.xlu0 %v665, 57
      %v739 = vpop.permute.xlu0 %738
      %v740 = vrot.slane %v737, 4
      %v741 = vrot.slane %v739, 4
      %v742 = vsel %vm354, %v740, %v741
      %vm743 = vcmask 465920
      %v744 = vsel %vm743, %v737, %v742
      %v745 = vsel %vm743, %v739, %v741
      %748 = vst [vmem:[#allocation3 + $0x138] sm:$0xff] %v744
      %749 = vst.msk [vmem:[#allocation3 + $0x140] sm:$0xf] %vm346, %v745
      %750 = vrot.lane.b32.xlu0 %v664, 56
      %v751 = vpop.permute.xlu0 %750
      %752 = vrot.lane.b32.xlu0 %v665, 56
      %v753 = vpop.permute.xlu0 %752
      %v754 = vrot.slane %v751, 4
      %v755 = vrot.slane %v753, 4
      %v756 = vsel %vm354, %v754, %v755
      %vm757 = vcmask 457728
      %v758 = vsel %vm757, %v751, %v756
      %v759 = vsel %vm757, %v753, %v755
      %762 = vst [vmem:[#allocation3 + $0x144] sm:$0xff] %v758
      %763 = vst.msk [vmem:[#allocation3 + $0x14c] sm:$0xf] %vm346, %v759
      %v764 = vld [vmem:[#allocation2] sm:$0xff]
      %v765 = vld [vmem:[#allocation2 + $0x8] sm:$0xff]
      %v766 = vld [vmem:[#allocation2 + $0x10] sm:$0xff]
      %v767 = vld [vmem:[#allocation2 + $0x18] sm:$0xff]
      %v768 = vpack.c.bf16 %v764, %v764
      %v769 = vpack.c.bf16 %v765, %v765
      %v770 = vpack.c.bf16 %v766, %v766
      %v771 = vpack.c.bf16 %v767, %v767
      %v776 = vunpack.c.l.b16 %v768
      %v777 = vunpack.c.l.b16 %v769
      %v778 = vunpack.c.l.b16 %v770
      %v779 = vunpack.c.l.b16 %v771
      %v780 = vpack.c.b16 %v777, %v776
      %v781 = vpack.c.b16 %v779, %v778
      %782 = vrot.lane.b32.xlu0 %v780, 40
      %v783 = vpop.permute.xlu0 %782
      %784 = vrot.lane.b32.xlu0 %v781, 40
      %v785 = vpop.permute.xlu0 %784
      %v786 = vrot.slane %v783, 4
      %v787 = vrot.slane %v785, 4
      %v788 = vsel %vm354, %v786, %v787
      %vm789 = vcmask 326656
      %v790 = vsel %vm789, %v783, %v788
      %v791 = vsel %vm789, %v785, %v787
      %794 = vst [vmem:[#allocation3 + $0x150] sm:$0xff] %v790
      %795 = vst.msk [vmem:[#allocation3 + $0x158] sm:$0xf] %vm346, %v791
      %796 = vrot.lane.b32.xlu0 %v780, 39
      %v797 = vpop.permute.xlu0 %796
      %798 = vrot.lane.b32.xlu0 %v781, 39
      %v799 = vpop.permute.xlu0 %798
      %v800 = vrot.slane %v797, 4
      %v801 = vrot.slane %v799, 4
      %v802 = vsel %vm354, %v800, %v801
      %vm803 = vcmask 318464
      %v804 = vsel %vm803, %v797, %v802
      %v805 = vsel %vm803, %v799, %v801
      %808 = vst [vmem:[#allocation3 + $0x15c] sm:$0xff] %v804
      %809 = vst.msk [vmem:[#allocation3 + $0x164] sm:$0xf] %vm346, %v805
      %810 = vrot.lane.b32.xlu0 %v780, 38
      %v811 = vpop.permute.xlu0 %810
      %812 = vrot.lane.b32.xlu0 %v781, 38
      %v813 = vpop.permute.xlu0 %812
      %v814 = vrot.slane %v811, 4
      %v815 = vrot.slane %v813, 4
      %v816 = vsel %vm354, %v814, %v815
      %vm817 = vcmask 310272
      %v818 = vsel %vm817, %v811, %v816
      %v819 = vsel %vm817, %v813, %v815
      %822 = vst [vmem:[#allocation3 + $0x168] sm:$0xff] %v818
      %823 = vst.msk [vmem:[#allocation3 + $0x170] sm:$0xf] %vm346, %v819
      %824 = vrot.lane.b32.xlu0 %v780, 37
      %v825 = vpop.permute.xlu0 %824
      %826 = vrot.lane.b32.xlu0 %v781, 37
      %v827 = vpop.permute.xlu0 %826
      %v828 = vrot.slane %v825, 4
      %v829 = vrot.slane %v827, 4
      %v830 = vsel %vm354, %v828, %v829
      %vm831 = vcmask 302080
      %v832 = vsel %vm831, %v825, %v830
      %v833 = vsel %vm831, %v827, %v829
      %836 = vst [vmem:[#allocation3 + $0x174] sm:$0xff] %v832
      %837 = vst.msk [vmem:[#allocation3 + $0x17c] sm:$0xf] %vm346, %v833
      %838 = vrot.lane.b32.xlu0 %v780, 36
      %v839 = vpop.permute.xlu0 %838
      %840 = vrot.lane.b32.xlu0 %v781, 36
      %v841 = vpop.permute.xlu0 %840
      %v842 = vrot.slane %v839, 4
      %v843 = vrot.slane %v841, 4
      %v844 = vsel %vm354, %v842, %v843
      %vm845 = vcmask 293888
      %v846 = vsel %vm845, %v839, %v844
      %v847 = vsel %vm845, %v841, %v843
      %850 = vst [vmem:[#allocation3 + $0x180] sm:$0xff] %v846
      %851 = vst.msk [vmem:[#allocation3 + $0x188] sm:$0xf] %vm346, %v847
      %852 = vrot.lane.b32.xlu0 %v780, 35
      %v853 = vpop.permute.xlu0 %852
      %854 = vrot.lane.b32.xlu0 %v781, 35
      %v855 = vpop.permute.xlu0 %854
      %v856 = vrot.slane %v853, 4
      %v857 = vrot.slane %v855, 4
      %v858 = vsel %vm354, %v856, %v857
      %vm859 = vcmask 285696
      %v860 = vsel %vm859, %v853, %v858
      %v861 = vsel %vm859, %v855, %v857
      %864 = vst [vmem:[#allocation3 + $0x18c] sm:$0xff] %v860
      %865 = vst.msk [vmem:[#allocation3 + $0x194] sm:$0xf] %vm346, %v861
      %866 = vrot.lane.b32.xlu0 %v780, 34
      %v867 = vpop.permute.xlu0 %866
      %868 = vrot.lane.b32.xlu0 %v781, 34
      %v869 = vpop.permute.xlu0 %868
      %v870 = vrot.slane %v867, 4
      %v871 = vrot.slane %v869, 4
      %v872 = vsel %vm354, %v870, %v871
      %vm873 = vcmask 277504
      %v874 = vsel %vm873, %v867, %v872
      %v875 = vsel %vm873, %v869, %v871
      %878 = vst [vmem:[#allocation3 + $0x198] sm:$0xff] %v874
      %879 = vst.msk [vmem:[#allocation3 + $0x1a0] sm:$0xf] %vm346, %v875
      %v880 = vld [vmem:[#allocation2] sm:$0xff]
      %v881 = vld [vmem:[#allocation2 + $0x8] sm:$0xff]
      %v882 = vld [vmem:[#allocation2 + $0x10] sm:$0xff]
      %v883 = vld [vmem:[#allocation2 + $0x18] sm:$0xff]
      %v884 = vpack.c.bf16 %v880, %v880
      %v885 = vpack.c.bf16 %v881, %v881
      %v886 = vpack.c.bf16 %v882, %v882
      %v887 = vpack.c.bf16 %v883, %v883
      %v892 = vunpack.c.l.b16 %v884
      %v893 = vunpack.c.l.b16 %v885
      %v894 = vunpack.c.l.b16 %v886
      %v895 = vunpack.c.l.b16 %v887
      %v896 = vpack.c.b16 %v893, %v892
      %v897 = vpack.c.b16 %v895, %v894
      %898 = vrot.lane.b32.xlu0 %v896, 18
      %v899 = vpop.permute.xlu0 %898
      %900 = vrot.lane.b32.xlu0 %v897, 18
      %v901 = vpop.permute.xlu0 %900
      %v902 = vrot.slane %v899, 4
      %v903 = vrot.slane %v901, 4
      %v904 = vsel %vm354, %v902, %v903
      %vm905 = vcmask 146432
      %v906 = vsel %vm905, %v899, %v904
      %v907 = vsel %vm905, %v901, %v903
      %910 = vst [vmem:[#allocation3 + $0x1a4] sm:$0xff] %v906
      %911 = vst.msk [vmem:[#allocation3 + $0x1ac] sm:$0xf] %vm346, %v907
      %912 = vrot.lane.b32.xlu0 %v896, 17
      %v913 = vpop.permute.xlu0 %912
      %914 = vrot.lane.b32.xlu0 %v897, 17
      %v915 = vpop.permute.xlu0 %914
      %v916 = vrot.slane %v913, 4
      %v917 = vrot.slane %v915, 4
      %v918 = vsel %vm354, %v916, %v917
      %vm919 = vcmask 138240
      %v920 = vsel %vm919, %v913, %v918
      %v921 = vsel %vm919, %v915, %v917
      %924 = vst [vmem:[#allocation3 + $0x1b0] sm:$0xff] %v920
      %925 = vst.msk [vmem:[#allocation3 + $0x1b8] sm:$0xf] %vm346, %v921
      %926 = vrot.lane.b32.xlu0 %v896, 16
      %v927 = vpop.permute.xlu0 %926
      %928 = vrot.lane.b32.xlu0 %v897, 16
      %v929 = vpop.permute.xlu0 %928
      %v930 = vrot.slane %v927, 4
      %v931 = vrot.slane %v929, 4
      %v932 = vsel %vm354, %v930, %v931
      %vm933 = vcmask 130048
      %v934 = vsel %vm933, %v927, %v932
      %v935 = vsel %vm933, %v929, %v931
      %938 = vst [vmem:[#allocation3 + $0x1bc] sm:$0xff] %v934
      %939 = vst.msk [vmem:[#allocation3 + $0x1c4] sm:$0xf] %vm346, %v935
      %940 = vrot.lane.b32.xlu0 %v896, 15
      %v941 = vpop.permute.xlu0 %940
      %942 = vrot.lane.b32.xlu0 %v897, 15
      %v943 = vpop.permute.xlu0 %942
      %v944 = vrot.slane %v941, 4
      %v945 = vrot.slane %v943, 4
      %v946 = vsel %vm354, %v944, %v945
      %vm947 = vcmask 121856
      %v948 = vsel %vm947, %v941, %v946
      %v949 = vsel %vm947, %v943, %v945
      %952 = vst [vmem:[#allocation3 + $0x1c8] sm:$0xff] %v948
      %953 = vst.msk [vmem:[#allocation3 + $0x1d0] sm:$0xf] %vm346, %v949
      %954 = vrot.lane.b32.xlu0 %v896, 14
      %v955 = vpop.permute.xlu0 %954
      %956 = vrot.lane.b32.xlu0 %v897, 14
      %v957 = vpop.permute.xlu0 %956
      %v958 = vrot.slane %v955, 4
      %v959 = vrot.slane %v957, 4
      %v960 = vsel %vm354, %v958, %v959
      %vm961 = vcmask 113664
      %v962 = vsel %vm961, %v955, %v960
      %v963 = vsel %vm961, %v957, %v959
      %966 = vst [vmem:[#allocation3 + $0x1d4] sm:$0xff] %v962
      %967 = vst.msk [vmem:[#allocation3 + $0x1dc] sm:$0xf] %vm346, %v963
      %968 = vrot.lane.b32.xlu0 %v896, 13
      %v969 = vpop.permute.xlu0 %968
      %970 = vrot.lane.b32.xlu0 %v897, 13
      %v971 = vpop.permute.xlu0 %970
      %v972 = vrot.slane %v969, 4
      %v973 = vrot.slane %v971, 4
      %v974 = vsel %vm354, %v972, %v973
      %vm975 = vcmask 105472
      %v976 = vsel %vm975, %v969, %v974
      %v977 = vsel %vm975, %v971, %v973
      %980 = vst [vmem:[#allocation3 + $0x1e0] sm:$0xff] %v976
      %981 = vst.msk [vmem:[#allocation3 + $0x1e8] sm:$0xf] %vm346, %v977
      %982 = vrot.lane.b32.xlu0 %v896, 12
      %v983 = vpop.permute.xlu0 %982
      %984 = vrot.lane.b32.xlu0 %v897, 12
      %v985 = vpop.permute.xlu0 %984
      %v986 = vrot.slane %v983, 4
      %v987 = vrot.slane %v985, 4
      %v988 = vsel %vm354, %v986, %v987
      %vm989 = vcmask 97280
      %v990 = vsel %vm989, %v983, %v988
      %v991 = vsel %vm989, %v985, %v987
      %994 = vst [vmem:[#allocation3 + $0x1ec] sm:$0xff] %v990
      %995 = vst.msk [vmem:[#allocation3 + $0x1f4] sm:$0xf] %vm346, %v991
      %v996 = vld [vmem:[#allocation2 + $0x8] sm:$0xff]
      %v997 = vld [vmem:[#allocation2 + $0x10] sm:$0xff]
      %v998 = vld [vmem:[#allocation2 + $0x18] sm:$0xff]
      %v999 = vpack.c.bf16 %v996, %v996
      %v1000 = vpack.c.bf16 %v997, %v997
      %v1001 = vpack.c.bf16 %v998, %v998
      %v1005 = vunpack.c.l.b16 %v999
      %v1006 = vunpack.c.l.b16 %v1000
      %v1007 = vunpack.c.l.b16 %v1001
      %v1008 = vpack.c.b16 %v1006, %v1005
      %v1009 = vpack.c.b16 %v1007, %v1007
      %1010 = vrot.lane.b32.xlu0 %v1008, 124
      %v1011 = vpop.permute.xlu0 %1010
      %1012 = vrot.lane.b32.xlu0 %v1009, 124
      %v1013 = vpop.permute.xlu0 %1012
      %v1014 = vrot.slane %v1011, 4
      %v1015 = vrot.slane %v1013, 4
      %v1016 = vsel %vm354, %v1014, %v1015
      %v1017 = vsel %vm395, %v1011, %v1016
      %1020 = vst [vmem:[#allocation3 + $0x1f8] sm:$0xff] %v1017
      %1021 = vst.msk [vmem:[#allocation3 + $0x200] sm:$0xf] %vm346, %v1013
      %1022 = vrot.lane.b32.xlu0 %v1008, 123
      %v1023 = vpop.permute.xlu0 %1022
      %1024 = vrot.lane.b32.xlu0 %v1009, 123
      %v1025 = vpop.permute.xlu0 %1024
      %v1026 = vrot.slane %v1023, 4
      %v1027 = vrot.slane %v1025, 4
      %v1028 = vsel %vm354, %v1026, %v1027
      %v1029 = vsel %vm408, %v1023, %v1028
      %1032 = vst [vmem:[#allocation3 + $0x204] sm:$0xff] %v1029
      %1033 = vst.msk [vmem:[#allocation3 + $0x20c] sm:$0xf] %vm346, %v1025
      %1034 = vrot.lane.b32.xlu0 %v1008, 122
      %v1035 = vpop.permute.xlu0 %1034
      %1036 = vrot.lane.b32.xlu0 %v1009, 122
      %v1037 = vpop.permute.xlu0 %1036
      %v1038 = vrot.slane %v1035, 4
      %v1039 = vrot.slane %v1037, 4
      %v1040 = vsel %vm354, %v1038, %v1039
      %v1041 = vsel %vm421, %v1035, %v1040
      %1044 = vst [vmem:[#allocation3 + $0x210] sm:$0xff] %v1041
      %1045 = vst.msk [vmem:[#allocation3 + $0x218] sm:$0xf] %vm346, %v1037
      %1046 = vrot.lane.b32.xlu0 %v1008, 121
      %v1047 = vpop.permute.xlu0 %1046
      %1048 = vrot.lane.b32.xlu0 %v1009, 121
      %v1049 = vpop.permute.xlu0 %1048
      %v1050 = vrot.slane %v1047, 4
      %v1051 = vrot.slane %v1049, 4
      %v1052 = vsel %vm354, %v1050, %v1051
      %vm1053 = vcmask 990208
      %v1054 = vsel %vm1053, %v1047, %v1052
      %1057 = vst [vmem:[#allocation3 + $0x21c] sm:$0xff] %v1054
      %1058 = vst.msk [vmem:[#allocation3 + $0x224] sm:$0xf] %vm346, %v1049
      %1059 = vrot.lane.b32.xlu0 %v1008, 120
      %v1060 = vpop.permute.xlu0 %1059
      %1061 = vrot.lane.b32.xlu0 %v1009, 120
      %v1062 = vpop.permute.xlu0 %1061
      %v1063 = vrot.slane %v1060, 4
      %v1064 = vrot.slane %v1062, 4
      %v1065 = vsel %vm354, %v1063, %v1064
      %vm1066 = vcmask 982016
      %v1067 = vsel %vm1066, %v1060, %v1065
      %1070 = vst [vmem:[#allocation3 + $0x228] sm:$0xff] %v1067
      %1071 = vst.msk [vmem:[#allocation3 + $0x230] sm:$0xf] %vm346, %v1062
      %1072 = vrot.lane.b32.xlu0 %v1008, 119
      %v1073 = vpop.permute.xlu0 %1072
      %1074 = vrot.lane.b32.xlu0 %v1009, 119
      %v1075 = vpop.permute.xlu0 %1074
      %v1076 = vrot.slane %v1073, 4
      %v1077 = vrot.slane %v1075, 4
      %v1078 = vsel %vm354, %v1076, %v1077
      %vm1079 = vcmask 973824
      %v1080 = vsel %vm1079, %v1073, %v1078
      %1083 = vst [vmem:[#allocation3 + $0x234] sm:$0xff] %v1080
      %1084 = vst.msk [vmem:[#allocation3 + $0x23c] sm:$0xf] %vm346, %v1075
      %1085 = vrot.lane.b32.xlu0 %v1008, 118
      %v1086 = vpop.permute.xlu0 %1085
      %1087 = vrot.lane.b32.xlu0 %v1009, 118
      %v1088 = vpop.permute.xlu0 %1087
      %v1089 = vrot.slane %v1086, 4
      %v1090 = vrot.slane %v1088, 4
      %v1091 = vsel %vm354, %v1089, %v1090
      %vm1092 = vcmask 965632
      %v1093 = vsel %vm1092, %v1086, %v1091
      %1096 = vst [vmem:[#allocation3 + $0x240] sm:$0xff] %v1093
      %1097 = vst.msk [vmem:[#allocation3 + $0x248] sm:$0xf] %vm346, %v1088
      %v1098 = vld [vmem:[%s1] sm:$0xff]
      %v1099 = vld [vmem:[%s1 + $0x8] sm:$0xff]
      %v1100 = vld [vmem:[%s1 + $0x10] sm:$0xff]
      %v1101 = vld [vmem:[%s1 + $0x18] sm:$0xff]
      %v1102 = vld [vmem:[%s1 + $0x20] sm:$0xff]
      %v1103 = vld [vmem:[%s1 + $0x28] sm:$0xff]
      %v1104 = vld [vmem:[%s2] sm:$0xf]
      %v1105 = vld [vmem:[#allocation3] sm:$0xff]
      %v1106 = vld [vmem:[#allocation3 + $0x8] sm:$0xf]
      %v1107 = vld [vmem:[#allocation3 + $0xc] sm:$0xff]
      %v1108 = vld [vmem:[#allocation3 + $0x14] sm:$0xf]
      %v1109 = vld [vmem:[#allocation3 + $0x18] sm:$0xff]
      %v1110 = vld [vmem:[#allocation3 + $0x20] sm:$0xf]
      %v1111 = vld [vmem:[#allocation3 + $0x24] sm:$0xff]
      %v1112 = vld [vmem:[#allocation3 + $0x2c] sm:$0xf]
      %v1113 = vld [vmem:[#allocation3 + $0x30] sm:$0xff]
      %v1114 = vld [vmem:[#allocation3 + $0x38] sm:$0xf]
      %v1115 = vld [vmem:[#allocation3 + $0x3c] sm:$0xff]
      %v1116 = vld [vmem:[#allocation3 + $0x44] sm:$0xf]
      %v1117 = vld [vmem:[#allocation3 + $0x48] sm:$0xff]
      %v1118 = vld [vmem:[#allocation3 + $0x50] sm:$0xf]
      %v1119 = vld [vmem:[#allocation3 + $0x54] sm:$0xff]
      %v1120 = vld [vmem:[#allocation3 + $0x5c] sm:$0xf]
      %v1121 = vld [vmem:[#allocation3 + $0x60] sm:$0xff]
      %v1122 = vld [vmem:[#allocation3 + $0x68] sm:$0xf]
      %v1123 = vld [vmem:[#allocation3 + $0x6c] sm:$0xff]
      %v1124 = vld [vmem:[#allocation3 + $0x74] sm:$0xf]
      %v1125 = vld [vmem:[#allocation3 + $0x78] sm:$0xff]
      %v1126 = vld [vmem:[#allocation3 + $0x80] sm:$0xf]
      %v1127 = vld [vmem:[#allocation3 + $0x84] sm:$0xff]
      %v1128 = vld [vmem:[#allocation3 + $0x8c] sm:$0xf]
      %v1129 = vld [vmem:[#allocation3 + $0x90] sm:$0xff]
      %v1130 = vld [vmem:[#allocation3 + $0x98] sm:$0xf]
      %v1131 = vld [vmem:[#allocation3 + $0x9c] sm:$0xff]
      %v1132 = vld [vmem:[#allocation3 + $0xa4] sm:$0xf]
      %v1133 = vld [vmem:[#allocation3 + $0xa8] sm:$0xff]
      %v1134 = vld [vmem:[#allocation3 + $0xb0] sm:$0xf]
      %v1135 = vld [vmem:[#allocation3 + $0xb4] sm:$0xff]
      %v1136 = vld [vmem:[#allocation3 + $0xbc] sm:$0xf]
      %v1137 = vld [vmem:[#allocation3 + $0xc0] sm:$0xff]
      %v1138 = vld [vmem:[#allocation3 + $0xc8] sm:$0xf]
      %v1139 = vld [vmem:[#allocation3 + $0xcc] sm:$0xff]
      %v1140 = vld [vmem:[#allocation3 + $0xd4] sm:$0xf]
      %v1141 = vld [vmem:[#allocation3 + $0xd8] sm:$0xff]
      %v1142 = vld [vmem:[#allocation3 + $0xe0] sm:$0xf]
      %v1143 = vld [vmem:[#allocation3 + $0xe4] sm:$0xff]
      %v1144 = vld [vmem:[#allocation3 + $0xec] sm:$0xf]
      %v1145 = vld [vmem:[#allocation3 + $0xf0] sm:$0xff]
      %v1146 = vld [vmem:[#allocation3 + $0xf8] sm:$0xf]
      %v1147 = vld [vmem:[#allocation3 + $0xfc] sm:$0xff]
      %v1148 = vld [vmem:[#allocation3 + $0x104] sm:$0xf]
      %v1149 = vld [vmem:[#allocation3 + $0x108] sm:$0xff]
      %v1150 = vld [vmem:[#allocation3 + $0x110] sm:$0xf]
      %v1151 = vld [vmem:[#allocation3 + $0x114] sm:$0xff]
      %v1152 = vld [vmem:[#allocation3 + $0x11c] sm:$0xf]
      %v1153 = vld [vmem:[#allocation3 + $0x120] sm:$0xff]
      %v1154 = vld [vmem:[#allocation3 + $0x128] sm:$0xf]
      %v1155 = vld [vmem:[#allocation3 + $0x12c] sm:$0xff]
      %v1156 = vld [vmem:[#allocation3 + $0x134] sm:$0xf]
      %v1157 = vld [vmem:[#allocation3 + $0x138] sm:$0xff]
      %v1158 = vld [vmem:[#allocation3 + $0x140] sm:$0xf]
      %v1159 = vld [vmem:[#allocation3 + $0x144] sm:$0xff]
      %v1160 = vld [vmem:[#allocation3 + $0x14c] sm:$0xf]
      %v1161 = vld [vmem:[#allocation3 + $0x150] sm:$0xff]
      %v1162 = vld [vmem:[#allocation3 + $0x158] sm:$0xf]
      %v1163 = vld [vmem:[#allocation3 + $0x15c] sm:$0xff]
      %v1164 = vld [vmem:[#allocation3 + $0x164] sm:$0xf]
      %v1165 = vld [vmem:[#allocation3 + $0x168] sm:$0xff]
      %v1166 = vld [vmem:[#allocation3 + $0x170] sm:$0xf]
      %v1167 = vld [vmem:[#allocation3 + $0x174] sm:$0xff]
      %v1168 = vld [vmem:[#allocation3 + $0x17c] sm:$0xf]
      %v1169 = vld [vmem:[#allocation3 + $0x180] sm:$0xff]
      %v1170 = vld [vmem:[#allocation3 + $0x188] sm:$0xf]
      %v1171 = vld [vmem:[#allocation3 + $0x18c] sm:$0xff]
      %v1172 = vld [vmem:[#allocation3 + $0x194] sm:$0xf]
      %v1173 = vld [vmem:[#allocation3 + $0x198] sm:$0xff]
      %v1174 = vld [vmem:[#allocation3 + $0x1a0] sm:$0xf]
      %v1175 = vld [vmem:[#allocation3 + $0x1a4] sm:$0xff]
      %v1176 = vld [vmem:[#allocation3 + $0x1ac] sm:$0xf]
      %v1177 = vld [vmem:[#allocation3 + $0x1b0] sm:$0xff]
      %v1178 = vld [vmem:[#allocation3 + $0x1b8] sm:$0xf]
      %v1179 = vld [vmem:[#allocation3 + $0x1bc] sm:$0xff]
      %v1180 = vld [vmem:[#allocation3 + $0x1c4] sm:$0xf]
      %v1181 = vld [vmem:[#allocation3 + $0x1c8] sm:$0xff]
      %v1182 = vld [vmem:[#allocation3 + $0x1d0] sm:$0xf]
      %v1183 = vld [vmem:[#allocation3 + $0x1d4] sm:$0xff]
      %v1184 = vld [vmem:[#allocation3 + $0x1dc] sm:$0xf]
      %v1185 = vld [vmem:[#allocation3 + $0x1e0] sm:$0xff]
      %v1186 = vld [vmem:[#allocation3 + $0x1e8] sm:$0xf]
      %v1187 = vld [vmem:[#allocation3 + $0x1ec] sm:$0xff]
      %v1188 = vld [vmem:[#allocation3 + $0x1f4] sm:$0xf]
      %v1189 = vld [vmem:[#allocation3 + $0x1f8] sm:$0xff]
      %v1190 = vld [vmem:[#allocation3 + $0x200] sm:$0xf]
      %v1191 = vld [vmem:[#allocation3 + $0x204] sm:$0xff]
      %v1192 = vld [vmem:[#allocation3 + $0x20c] sm:$0xf]
      %v1193 = vld [vmem:[#allocation3 + $0x210] sm:$0xff]
      %v1194 = vld [vmem:[#allocation3 + $0x218] sm:$0xf]
      %v1195 = vld [vmem:[#allocation3 + $0x21c] sm:$0xff]
      %v1196 = vld [vmem:[#allocation3 + $0x224] sm:$0xf]
      %v1197 = vld [vmem:[#allocation3 + $0x228] sm:$0xff]
      %v1198 = vld [vmem:[#allocation3 + $0x230] sm:$0xf]
      %v1199 = vld [vmem:[#allocation3 + $0x234] sm:$0xff]
      %v1200 = vld [vmem:[#allocation3 + $0x23c] sm:$0xf]
      %v1201 = vld [vmem:[#allocation3 + $0x240] sm:$0xff]
      %v1202 = vld [vmem:[#allocation3 + $0x248] sm:$0xf]
      %v1209 = vunpack.c.l.b16 %v1098
      %v1210 = vunpack.c.h.b16 %v1098
      %v1211 = vunpack.c.l.b16 %v1099
      %v1212 = vunpack.c.h.b16 %v1099
      %v1213 = vunpack.c.l.b16 %v1100
      %v1214 = vunpack.c.h.b16 %v1100
      %v1215 = vunpack.c.l.b16 %v1101
      %v1216 = vunpack.c.h.b16 %v1101
      %v1217 = vunpack.c.l.b16 %v1102
      %v1218 = vunpack.c.h.b16 %v1102
      %v1219 = vunpack.c.l.b16 %v1103
      %v1220 = vunpack.c.h.b16 %v1103
      %v1221 = vpack.c.b16 %v1213, %v1209
      %v1222 = vpack.c.b16 %v1214, %v1210
      %v1223 = vpack.c.b16 %v1215, %v1211
      %v1224 = vpack.c.b16 %v1216, %v1212
      %v1225 = vpack.c.b16 %v1217, %v1217
      %v1226 = vpack.c.b16 %v1218, %v1218
      %v1227 = vpack.c.b16 %v1219, %v1219
      %v1228 = vpack.c.b16 %v1220, %v1220
      %v1333 = vunpack.c.l.b16 %v1105
      %v1334 = vunpack.c.h.b16 %v1105
      %v1335 = vunpack.c.l.b16 %v1106
      %v1336 = vunpack.c.l.b16 %v1107
      %v1337 = vunpack.c.h.b16 %v1107
      %v1338 = vunpack.c.l.b16 %v1108
      %v1339 = vunpack.c.l.b16 %v1109
      %v1340 = vunpack.c.h.b16 %v1109
      %v1341 = vunpack.c.l.b16 %v1110
      %v1342 = vunpack.c.l.b16 %v1111
      %v1343 = vunpack.c.h.b16 %v1111
      %v1344 = vunpack.c.l.b16 %v1112
      %v1345 = vunpack.c.l.b16 %v1113
      %v1346 = vunpack.c.h.b16 %v1113
      %v1347 = vunpack.c.l.b16 %v1114
      %v1348 = vunpack.c.l.b16 %v1115
      %v1349 = vunpack.c.h.b16 %v1115
      %v1350 = vunpack.c.l.b16 %v1116
      %v1351 = vunpack.c.l.b16 %v1117
      %v1352 = vunpack.c.h.b16 %v1117
      %v1353 = vunpack.c.l.b16 %v1118
      %v1354 = vunpack.c.l.b16 %v1119
      %v1355 = vunpack.c.h.b16 %v1119
      %v1356 = vunpack.c.l.b16 %v1120
      %v1357 = vunpack.c.l.b16 %v1121
      %v1358 = vunpack.c.h.b16 %v1121
      %v1359 = vunpack.c.l.b16 %v1122
      %v1360 = vunpack.c.l.b16 %v1123
      %v1361 = vunpack.c.h.b16 %v1123
      %v1362 = vunpack.c.l.b16 %v1124
      %v1363 = vunpack.c.l.b16 %v1125
      %v1364 = vunpack.c.h.b16 %v1125
      %v1365 = vunpack.c.l.b16 %v1126
      %v1366 = vunpack.c.l.b16 %v1127
      %v1367 = vunpack.c.h.b16 %v1127
      %v1368 = vunpack.c.l.b16 %v1128
      %v1369 = vunpack.c.l.b16 %v1129
      %v1370 = vunpack.c.h.b16 %v1129
      %v1371 = vunpack.c.l.b16 %v1130
      %v1372 = vunpack.c.l.b16 %v1131
      %v1373 = vunpack.c.h.b16 %v1131
      %v1374 = vunpack.c.l.b16 %v1132
      %v1375 = vunpack.c.l.b16 %v1133
      %v1376 = vunpack.c.h.b16 %v1133
      %v1377 = vunpack.c.l.b16 %v1134
      %v1378 = vunpack.c.l.b16 %v1135
      %v1379 = vunpack.c.h.b16 %v1135
      %v1380 = vunpack.c.l.b16 %v1136
      %v1381 = vunpack.c.l.b16 %v1137
      %v1382 = vunpack.c.h.b16 %v1137
      %v1383 = vunpack.c.l.b16 %v1138
      %v1384 = vunpack.c.l.b16 %v1139
      %v1385 = vunpack.c.h.b16 %v1139
      %v1386 = vunpack.c.l.b16 %v1140
      %v1387 = vunpack.c.l.b16 %v1141
      %v1388 = vunpack.c.h.b16 %v1141
      %v1389 = vunpack.c.l.b16 %v1142
      %v1390 = vunpack.c.l.b16 %v1143
      %v1391 = vunpack.c.h.b16 %v1143
      %v1392 = vunpack.c.l.b16 %v1144
      %v1393 = vunpack.c.l.b16 %v1145
      %v1394 = vunpack.c.h.b16 %v1145
      %v1395 = vunpack.c.l.b16 %v1146
      %v1396 = vunpack.c.l.b16 %v1147
      %v1397 = vunpack.c.h.b16 %v1147
      %v1398 = vunpack.c.l.b16 %v1148
      %v1399 = vunpack.c.l.b16 %v1149
      %v1400 = vunpack.c.h.b16 %v1149
      %v1401 = vunpack.c.l.b16 %v1150
      %v1402 = vunpack.c.l.b16 %v1151
      %v1403 = vunpack.c.h.b16 %v1151
      %v1404 = vunpack.c.l.b16 %v1152
      %v1405 = vunpack.c.l.b16 %v1153
      %v1406 = vunpack.c.h.b16 %v1153
      %v1407 = vunpack.c.l.b16 %v1154
      %v1408 = vunpack.c.l.b16 %v1155
      %v1409 = vunpack.c.h.b16 %v1155
      %v1410 = vunpack.c.l.b16 %v1156
      %v1411 = vunpack.c.l.b16 %v1157
      %v1412 = vunpack.c.h.b16 %v1157
      %v1413 = vunpack.c.l.b16 %v1158
      %v1414 = vunpack.c.l.b16 %v1159
      %v1415 = vunpack.c.h.b16 %v1159
      %v1416 = vunpack.c.l.b16 %v1160
      %v1417 = vunpack.c.l.b16 %v1161
      %v1418 = vunpack.c.h.b16 %v1161
      %v1419 = vunpack.c.l.b16 %v1162
      %v1420 = vunpack.c.l.b16 %v1163
      %v1421 = vunpack.c.h.b16 %v1163
      %v1422 = vunpack.c.l.b16 %v1164
      %v1423 = vunpack.c.l.b16 %v1165
      %v1424 = vunpack.c.h.b16 %v1165
      %v1425 = vunpack.c.l.b16 %v1166
      %v1426 = vunpack.c.l.b16 %v1167
      %v1427 = vunpack.c.h.b16 %v1167
      %v1428 = vunpack.c.l.b16 %v1168
      %v1429 = vunpack.c.l.b16 %v1169
      %v1430 = vunpack.c.h.b16 %v1169
      %v1431 = vunpack.c.l.b16 %v1170
      %v1432 = vunpack.c.l.b16 %v1171
      %v1433 = vunpack.c.h.b16 %v1171
      %v1434 = vunpack.c.l.b16 %v1172
      %v1435 = vunpack.c.l.b16 %v1173
      %v1436 = vunpack.c.h.b16 %v1173
      %v1437 = vunpack.c.l.b16 %v1174
      %v1438 = vunpack.c.l.b16 %v1175
      %v1439 = vunpack.c.h.b16 %v1175
      %v1440 = vunpack.c.l.b16 %v1176
      %v1441 = vunpack.c.l.b16 %v1177
      %v1442 = vunpack.c.h.b16 %v1177
      %v1443 = vunpack.c.l.b16 %v1178
      %v1444 = vunpack.c.l.b16 %v1179
      %v1445 = vunpack.c.h.b16 %v1179
      %v1446 = vunpack.c.l.b16 %v1180
      %v1447 = vunpack.c.l.b16 %v1181
      %v1448 = vunpack.c.h.b16 %v1181
      %v1449 = vunpack.c.l.b16 %v1182
      %v1450 = vunpack.c.l.b16 %v1183
      %v1451 = vunpack.c.h.b16 %v1183
      %v1452 = vunpack.c.l.b16 %v1184
      %v1453 = vunpack.c.l.b16 %v1185
      %v1454 = vunpack.c.h.b16 %v1185
      %v1455 = vunpack.c.l.b16 %v1186
      %v1456 = vunpack.c.l.b16 %v1187
      %v1457 = vunpack.c.h.b16 %v1187
      %v1458 = vunpack.c.l.b16 %v1188
      %v1459 = vunpack.c.l.b16 %v1189
      %v1460 = vunpack.c.h.b16 %v1189
      %v1461 = vunpack.c.l.b16 %v1190
      %v1462 = vunpack.c.l.b16 %v1191
      %v1463 = vunpack.c.h.b16 %v1191
      %v1464 = vunpack.c.l.b16 %v1192
      %v1465 = vunpack.c.l.b16 %v1193
      %v1466 = vunpack.c.h.b16 %v1193
      %v1467 = vunpack.c.l.b16 %v1194
      %v1468 = vunpack.c.l.b16 %v1195
      %v1469 = vunpack.c.h.b16 %v1195
      %v1470 = vunpack.c.l.b16 %v1196
      %v1471 = vunpack.c.l.b16 %v1197
      %v1472 = vunpack.c.h.b16 %v1197
      %v1473 = vunpack.c.l.b16 %v1198
      %v1474 = vunpack.c.l.b16 %v1199
      %v1475 = vunpack.c.h.b16 %v1199
      %v1476 = vunpack.c.l.b16 %v1200
      %v1477 = vunpack.c.l.b16 %v1201
      %v1478 = vunpack.c.h.b16 %v1201
      %v1479 = vunpack.c.l.b16 %v1202
      %v1480 = vpack.c.b16 %v1336, %v1333
      %v1481 = vpack.c.b16 %v1337, %v1334
      %v1482 = vpack.c.b16 %v1338, %v1335
      %v1483 = vpack.c.b16 %v1342, %v1339
      %v1484 = vpack.c.b16 %v1343, %v1340
      %v1485 = vpack.c.b16 %v1344, %v1341
      %v1486 = vpack.c.b16 %v1348, %v1345
      %v1487 = vpack.c.b16 %v1349, %v1346
      %v1488 = vpack.c.b16 %v1350, %v1347
      %v1489 = vpack.c.b16 %v1354, %v1351
      %v1490 = vpack.c.b16 %v1355, %v1352
      %v1491 = vpack.c.b16 %v1356, %v1353
      %v1492 = vpack.c.b16 %v1360, %v1357
      %v1493 = vpack.c.b16 %v1361, %v1358
      %v1494 = vpack.c.b16 %v1362, %v1359
      %v1495 = vpack.c.b16 %v1366, %v1363
      %v1496 = vpack.c.b16 %v1367, %v1364
      %v1497 = vpack.c.b16 %v1368, %v1365
      %v1498 = vpack.c.b16 %v1372, %v1369
      %v1499 = vpack.c.b16 %v1373, %v1370
      %v1500 = vpack.c.b16 %v1374, %v1371
      %v1501 = vpack.c.b16 %v1378, %v1375
      %v1502 = vpack.c.b16 %v1379, %v1376
      %v1503 = vpack.c.b16 %v1380, %v1377
      %v1504 = vpack.c.b16 %v1384, %v1381
      %v1505 = vpack.c.b16 %v1385, %v1382
      %v1506 = vpack.c.b16 %v1386, %v1383
      %v1507 = vpack.c.b16 %v1390, %v1387
      %v1508 = vpack.c.b16 %v1391, %v1388
      %v1509 = vpack.c.b16 %v1392, %v1389
      %v1510 = vpack.c.b16 %v1396, %v1393
      %v1511 = vpack.c.b16 %v1397, %v1394
      %v1512 = vpack.c.b16 %v1398, %v1395
      %v1513 = vpack.c.b16 %v1402, %v1399
      %v1514 = vpack.c.b16 %v1403, %v1400
      %v1515 = vpack.c.b16 %v1404, %v1401
      %v1516 = vpack.c.b16 %v1408, %v1405
      %v1517 = vpack.c.b16 %v1409, %v1406
      %v1518 = vpack.c.b16 %v1410, %v1407
      %v1519 = vpack.c.b16 %v1414, %v1411
      %v1520 = vpack.c.b16 %v1415, %v1412
      %v1521 = vpack.c.b16 %v1416, %v1413
      %v1522 = vpack.c.b16 %v1420, %v1417
      %v1523 = vpack.c.b16 %v1421, %v1418
      %v1524 = vpack.c.b16 %v1422, %v1419
      %v1525 = vpack.c.b16 %v1426, %v1423
      %v1526 = vpack.c.b16 %v1427, %v1424
      %v1527 = vpack.c.b16 %v1428, %v1425
      %v1528 = vpack.c.b16 %v1432, %v1429
      %v1529 = vpack.c.b16 %v1433, %v1430
      %v1530 = vpack.c.b16 %v1434, %v1431
      %v1531 = vpack.c.b16 %v1438, %v1435
      %v1532 = vpack.c.b16 %v1439, %v1436
      %v1533 = vpack.c.b16 %v1440, %v1437
      %v1534 = vpack.c.b16 %v1444, %v1441
      %v1535 = vpack.c.b16 %v1445, %v1442
      %v1536 = vpack.c.b16 %v1446, %v1443
      %v1537 = vpack.c.b16 %v1450, %v1447
      %v1538 = vpack.c.b16 %v1451, %v1448
      %v1539 = vpack.c.b16 %v1452, %v1449
      %v1540 = vpack.c.b16 %v1456, %v1453
      %v1541 = vpack.c.b16 %v1457, %v1454
      %v1542 = vpack.c.b16 %v1458, %v1455
      %v1543 = vpack.c.b16 %v1462, %v1459
      %v1544 = vpack.c.b16 %v1463, %v1460
      %v1545 = vpack.c.b16 %v1464, %v1461
      %v1546 = vpack.c.b16 %v1468, %v1465
      %v1547 = vpack.c.b16 %v1469, %v1466
      %v1548 = vpack.c.b16 %v1470, %v1467
      %v1549 = vpack.c.b16 %v1474, %v1471
      %v1550 = vpack.c.b16 %v1475, %v1472
      %v1551 = vpack.c.b16 %v1476, %v1473
      %v1552 = vpack.c.b16 %v1477, %v1477
      %v1553 = vpack.c.b16 %v1478, %v1478
      %v1554 = vpack.c.b16 %v1479, %v1479
      %vm1627 = vcmask 64512
      %v1629 = vsel %vm1627, %v1224, 0
      %v1632 = vsel %vm1627, %v1228, 0
      %vm1634 = vcmask 1043456
      %v1636 = vsel %vm1634, %v1552, 0
      %v1639 = vsel %vm1634, %v1553, 0
      %v1642 = vsel %vm1634, %v1554, 0
      %1644 = vmatprep.subr.bf16.mxu0 %v1502
      %1645 = vmatpush1.bf16.msra.mxu0 %v1501
      %1646 = vmatprep.subr.bf16.mxu0 %v1499
      %1647 = vmatpush1.bf16.msra.mxu0 %v1498
      %1648 = vmatprep.subr.bf16.mxu0 %v1496
      %1649 = vmatpush1.bf16.msra.mxu0 %v1495
      %1650 = vmatprep.subr.bf16.mxu0 %v1493
      %1651 = vmatpush1.bf16.msra.mxu0 %v1492
      %1652 = vmatprep.subr.bf16.mxu0 %v1490
      %1653 = vmatpush1.bf16.msra.mxu0 %v1489
      %1654 = vmatprep.subr.bf16.mxu0 %v1487
      %1655 = vmatpush1.bf16.msra.mxu0 %v1486
      %1656 = vmatprep.subr.bf16.mxu0 %v1484
      %1657 = vmatpush1.bf16.msra.mxu0 %v1483
      %1658 = vmatprep.subr.bf16.mxu0 %v1481
      %1659 = vmatpush1.bf16.msra.mxu0 %v1480
      %1660 = vmatprep.subr.bf16.mxu0 %v1526
      %1661 = vmatpush2.bf16.msra.mxu0 %v1525
      %1662 = vmatprep.subr.bf16.mxu0 %v1523
      %1663 = vmatpush2.bf16.msra.mxu0 %v1522
      %1664 = vmatprep.subr.bf16.mxu0 %v1520
      %1665 = vmatpush2.bf16.msra.mxu0 %v1519
      %1666 = vmatprep.subr.bf16.mxu0 %v1517
      %1667 = vmatpush2.bf16.msra.mxu0 %v1516
      %1668 = vmatprep.subr.bf16.mxu0 %v1514
      %1669 = vmatpush2.bf16.msra.mxu0 %v1513
      %1670 = vmatprep.subr.bf16.mxu0 %v1511
      %1671 = vmatpush2.bf16.msra.mxu0 %v1510
      %1672 = vmatprep.subr.bf16.mxu0 %v1508
      %1673 = vmatpush2.bf16.msra.mxu0 %v1507
      %1674 = vmatprep.subr.bf16.mxu0 %v1505
      %1675 = vmatpush2.bf16.msra.mxu0 %v1504
      %1676 = vmatprep.mubr.bf16.mxu0 %v1222
      %1677 = vmatmul.mubr.bf16.gmra.mxu0 %v1221
      %v1678 = vpop.f32.mrf.mxu0
      %v1679 = vadd.f32 0.0, %v1678
      %v1680 = vpop.f32.mrf.mxu0
      %v1681 = vadd.f32 0.0, %v1680
      %v1682 = vpop.f32.mrf.mxu0
      %v1683 = vadd.f32 0.0, %v1682
      %v1684 = vpop.f32.mrf.mxu0
      %v1685 = vadd.f32 0.0, %v1684
      %1686 = vmatprep.mubr.bf16.mxu0 %v1226
      %1687 = vmatmul.mubr.bf16.gmra.mxu0 %v1225
      %v1688 = vpop.f32.mrf.mxu0
      %v1689 = vadd.f32 0.0, %v1688
      %v1690 = vpop.f32.mrf.mxu0
      %v1691 = vadd.f32 0.0, %v1690
      %v1692 = vpop.f32.mrf.mxu0
      %v1693 = vpop.f32.mrf.mxu0
      %1694 = vdwg.mxu0
      %1695 = vmatprep.subr.bf16.mxu0 %v1550
      %1696 = vmatpush1.bf16.msra.mxu0 %v1549
      %1697 = vmatprep.subr.bf16.mxu0 %v1547
      %1698 = vmatpush1.bf16.msra.mxu0 %v1546
      %1699 = vmatprep.subr.bf16.mxu0 %v1544
      %1700 = vmatpush1.bf16.msra.mxu0 %v1543
      %1701 = vmatprep.subr.bf16.mxu0 %v1541
      %1702 = vmatpush1.bf16.msra.mxu0 %v1540
      %1703 = vmatprep.subr.bf16.mxu0 %v1538
      %1704 = vmatpush1.bf16.msra.mxu0 %v1537
      %1705 = vmatprep.subr.bf16.mxu0 %v1535
      %1706 = vmatpush1.bf16.msra.mxu0 %v1534
      %1707 = vmatprep.subr.bf16.mxu0 %v1532
      %1708 = vmatpush1.bf16.msra.mxu0 %v1531
      %1709 = vmatprep.subr.bf16.mxu0 %v1529
      %1710 = vmatpush1.bf16.msra.mxu0 %v1528
      %1711 = vmatprep.subr.bf16.mxu0 0
      %1712 = vmatpush2.bf16.msra.mxu0 0
      %1713 = vmatprep.subr.bf16.mxu0 0
      %1714 = vmatpush2.bf16.msra.mxu0 0
      %1715 = vmatprep.subr.bf16.mxu0 0
      %1716 = vmatpush2.bf16.msra.mxu0 0
      %1717 = vmatprep.subr.bf16.mxu0 0
      %1718 = vmatpush2.bf16.msra.mxu0 0
      %1719 = vmatprep.subr.bf16.mxu0 0
      %1720 = vmatpush2.bf16.msra.mxu0 0
      %1721 = vmatprep.subr.bf16.mxu0 0
      %1722 = vmatpush2.bf16.msra.mxu0 0
      %1723 = vmatprep.subr.bf16.mxu0 0
      %1724 = vmatpush2.bf16.msra.mxu0 0
      %1725 = vmatprep.subr.bf16.mxu0 %v1639
      %1726 = vmatpush2.bf16.msra.mxu0 %v1636
      %1727 = vmatprep.mubr.bf16.mxu0 %v1629
      %1728 = vmatmul.mubr.bf16.gmra.mxu0 %v1223
      %v1729 = vpop.f32.mrf.mxu0
      %v1730 = vadd.f32 %v1679, %v1729
      %v1731 = vpop.f32.mrf.mxu0
      %v1732 = vadd.f32 %v1681, %v1731
      %v1733 = vpop.f32.mrf.mxu0
      %v1734 = vadd.f32 %v1683, %v1733
      %v1735 = vpop.f32.mrf.mxu0
      %v1736 = vadd.f32 %v1685, %v1735
      %1737 = vmatprep.mubr.bf16.mxu0 %v1632
      %1738 = vmatmul.mubr.bf16.gmra.mxu0 %v1227
      %v1739 = vpop.f32.mrf.mxu0
      %v1740 = vadd.f32 %v1689, %v1739
      %v1741 = vpop.f32.mrf.mxu0
      %v1742 = vadd.f32 %v1691, %v1741
      %v1743 = vpop.f32.mrf.mxu0
      %v1744 = vpop.f32.mrf.mxu0
      %1745 = vdwg.mxu0
      %1746 = vmatprep.subr.bf16.mxu0 0
      %1747 = vmatpush1.bf16.msra.mxu0 %v1503
      %1748 = vmatprep.subr.bf16.mxu0 0
      %1749 = vmatpush1.bf16.msra.mxu0 %v1500
      %1750 = vmatprep.subr.bf16.mxu0 0
      %1751 = vmatpush1.bf16.msra.mxu0 %v1497
      %1752 = vmatprep.subr.bf16.mxu0 0
      %1753 = vmatpush1.bf16.msra.mxu0 %v1494
      %1754 = vmatprep.subr.bf16.mxu0 0
      %1755 = vmatpush1.bf16.msra.mxu0 %v1491
      %1756 = vmatprep.subr.bf16.mxu0 0
      %1757 = vmatpush1.bf16.msra.mxu0 %v1488
      %1758 = vmatprep.subr.bf16.mxu0 0
      %1759 = vmatpush1.bf16.msra.mxu0 %v1485
      %1760 = vmatprep.subr.bf16.mxu0 0
      %1761 = vmatpush1.bf16.msra.mxu0 %v1482
      %1762 = vmatprep.subr.bf16.mxu0 0
      %1763 = vmatpush2.bf16.msra.mxu0 %v1527
      %1764 = vmatprep.subr.bf16.mxu0 0
      %1765 = vmatpush2.bf16.msra.mxu0 %v1524
      %1766 = vmatprep.subr.bf16.mxu0 0
      %1767 = vmatpush2.bf16.msra.mxu0 %v1521
      %1768 = vmatprep.subr.bf16.mxu0 0
      %1769 = vmatpush2.bf16.msra.mxu0 %v1518
      %1770 = vmatprep.subr.bf16.mxu0 0
      %1771 = vmatpush2.bf16.msra.mxu0 %v1515
      %1772 = vmatprep.subr.bf16.mxu0 0
      %1773 = vmatpush2.bf16.msra.mxu0 %v1512
      %1774 = vmatprep.subr.bf16.mxu0 0
      %1775 = vmatpush2.bf16.msra.mxu0 %v1509
      %1776 = vmatprep.subr.bf16.mxu0 0
      %1777 = vmatpush2.bf16.msra.mxu0 %v1506
      %1778 = vmatprep.mubr.bf16.mxu0 %v1222
      %1779 = vmatmul.mubr.bf16.gmra.mxu0 %v1221
      %v1780 = vpop.f32.mrf.mxu0
      %v1781 = vadd.f32 0.0, %v1780
      %v1782 = vpop.f32.mrf.mxu0
      %v1783 = vpop.f32.mrf.mxu0
      %v1784 = vadd.f32 0.0, %v1783
      %v1785 = vpop.f32.mrf.mxu0
      %1786 = vmatprep.mubr.bf16.mxu0 %v1226
      %1787 = vmatmul.mubr.bf16.gmra.mxu0 %v1225
      %v1788 = vpop.f32.mrf.mxu0
      %v1789 = vadd.f32 0.0, %v1788
      %v1790 = vpop.f32.mrf.mxu0
      %v1791 = vpop.f32.mrf.mxu0
      %v1792 = vpop.f32.mrf.mxu0
      %1793 = vdwg.mxu0
      %1794 = vmatprep.subr.bf16.mxu0 0
      %1795 = vmatpush1.bf16.msra.mxu0 %v1551
      %1796 = vmatprep.subr.bf16.mxu0 0
      %1797 = vmatpush1.bf16.msra.mxu0 %v1548
      %1798 = vmatprep.subr.bf16.mxu0 0
      %1799 = vmatpush1.bf16.msra.mxu0 %v1545
      %1800 = vmatprep.subr.bf16.mxu0 0
      %1801 = vmatpush1.bf16.msra.mxu0 %v1542
      %1802 = vmatprep.subr.bf16.mxu0 0
      %1803 = vmatpush1.bf16.msra.mxu0 %v1539
      %1804 = vmatprep.subr.bf16.mxu0 0
      %1805 = vmatpush1.bf16.msra.mxu0 %v1536
      %1806 = vmatprep.subr.bf16.mxu0 0
      %1807 = vmatpush1.bf16.msra.mxu0 %v1533
      %1808 = vmatprep.subr.bf16.mxu0 0
      %1809 = vmatpush1.bf16.msra.mxu0 %v1530
      %1810 = vmatprep.subr.bf16.mxu0 0
      %1811 = vmatpush2.bf16.msra.mxu0 0
      %1812 = vmatprep.subr.bf16.mxu0 0
      %1813 = vmatpush2.bf16.msra.mxu0 0
      %1814 = vmatprep.subr.bf16.mxu0 0
      %1815 = vmatpush2.bf16.msra.mxu0 0
      %1816 = vmatprep.subr.bf16.mxu0 0
      %1817 = vmatpush2.bf16.msra.mxu0 0
      %1818 = vmatprep.subr.bf16.mxu0 0
      %1819 = vmatpush2.bf16.msra.mxu0 0
      %1820 = vmatprep.subr.bf16.mxu0 0
      %1821 = vmatpush2.bf16.msra.mxu0 0
      %1822 = vmatprep.subr.bf16.mxu0 0
      %1823 = vmatpush2.bf16.msra.mxu0 0
      %1824 = vmatprep.subr.bf16.mxu0 0
      %1825 = vmatpush2.bf16.msra.mxu0 %v1642
      %1826 = vmatprep.mubr.bf16.mxu0 %v1629
      %1827 = vmatmul.mubr.bf16.gmra.mxu0 %v1223
      %v1828 = vpop.f32.mrf.mxu0
      %v1829 = vadd.f32 %v1781, %v1828
      %v1830 = vpop.f32.mrf.mxu0
      %v1831 = vpop.f32.mrf.mxu0
      %v1832 = vadd.f32 %v1784, %v1831
      %v1833 = vpop.f32.mrf.mxu0
      %1834 = vmatprep.mubr.bf16.mxu0 %v1632
      %1835 = vmatmul.mubr.bf16.gmra.mxu0 %v1227
      %v1836 = vpop.f32.mrf.mxu0
      %v1837 = vadd.f32 %v1789, %v1836
      %v1838 = vpop.f32.mrf.mxu0
      %v1839 = vpop.f32.mrf.mxu0
      %v1840 = vpop.f32.mrf.mxu0
      %1841 = vdwg.mxu0
      %v1842 = vmax.f32 %v1730, 0.0
      %v1843 = vmax.f32 %v1732, 0.0
      %v1844 = vmax.f32 %v1829, 0.0
      %v1845 = vmax.f32 %v1734, 0.0
      %v1846 = vmax.f32 %v1736, 0.0
      %v1847 = vmax.f32 %v1832, 0.0
      %v1848 = vmax.f32 %v1740, 0.0
      %v1849 = vmax.f32 %v1742, 0.0
      %v1850 = vmax.f32 %v1837, 0.0
      %v1851 = vpack.c.bf16 %v1845, %v1842
      %v1852 = vpack.c.bf16 %v1846, %v1843
      %v1853 = vpack.c.bf16 %v1847, %v1844
      %v1854 = vpack.c.bf16 %v1848, %v1848
      %v1855 = vpack.c.bf16 %v1849, %v1849
      %v1856 = vpack.c.bf16 %v1850, %v1850
      %vm1857 = vcmask 195584
      %v1859 = vsel %vm1857, %v1104, 0
      %v1862 = vsel %vm1634, %v1854, 0
      %v1865 = vsel %vm1634, %v1855, 0
      %v1868 = vsel %vm1634, %v1856, 0
      %1870 = vmatprep.subr.bf16.mxu0 0
      %1871 = vmatpush1.bf16.msra.mxu0 0
      %1872 = vmatprep.subr.bf16.mxu0 0
      %1873 = vmatpush1.bf16.msra.mxu0 0
      %1874 = vmatprep.subr.bf16.mxu0 0
      %1875 = vmatpush1.bf16.msra.mxu0 0
      %1876 = vmatprep.subr.bf16.mxu0 0
      %1877 = vmatpush1.bf16.msra.mxu0 0
      %1878 = vmatprep.subr.bf16.mxu0 0
      %1879 = vmatpush1.bf16.msra.mxu0 0
      %1880 = vmatprep.subr.bf16.mxu0 0
      %1881 = vmatpush1.bf16.msra.mxu0 0
      %1882 = vmatprep.subr.bf16.mxu0 %v1865
      %1883 = vmatpush1.bf16.msra.mxu0 %v1862
      %1884 = vmatprep.subr.bf16.mxu0 %v1852
      %1885 = vmatpush1.bf16.msra.mxu0 %v1851
      %1886 = vmatprep.subr.bf16.mxu0 0
      %1887 = vmatpush2.bf16.msra.mxu0 0
      %1888 = vmatprep.subr.bf16.mxu0 0
      %1889 = vmatpush2.bf16.msra.mxu0 0
      %1890 = vmatprep.subr.bf16.mxu0 0
      %1891 = vmatpush2.bf16.msra.mxu0 0
      %1892 = vmatprep.subr.bf16.mxu0 0
      %1893 = vmatpush2.bf16.msra.mxu0 0
      %1894 = vmatprep.subr.bf16.mxu0 0
      %1895 = vmatpush2.bf16.msra.mxu0 0
      %1896 = vmatprep.subr.bf16.mxu0 0
      %1897 = vmatpush2.bf16.msra.mxu0 0
      %1898 = vmatprep.subr.bf16.mxu0 0
      %1899 = vmatpush2.bf16.msra.mxu0 0
      %1900 = vmatprep.subr.bf16.mxu0 0
      %1901 = vmatpush2.bf16.msra.mxu0 0
      %1902 = vmatprep.mubr.bf16.mxu0 0
      %1903 = vmatmul.mubr.bf16.gmra.mxu0 %v1859
      %v1904 = vpop.f32.mrf.mxu0
      %v1905 = vadd.f32 0.0, %v1904
      %v1906 = vpop.f32.mrf.mxu0
      %v1907 = vadd.f32 0.0, %v1906
      %v1908 = vpop.f32.mrf.mxu0
      %v1909 = vpop.f32.mrf.mxu0
      %1910 = vdwg.mxu0
      %1911 = vmatprep.subr.bf16.mxu0 0
      %1912 = vmatpush1.bf16.msra.mxu0 0
      %1913 = vmatprep.subr.bf16.mxu0 0
      %1914 = vmatpush1.bf16.msra.mxu0 0
      %1915 = vmatprep.subr.bf16.mxu0 0
      %1916 = vmatpush1.bf16.msra.mxu0 0
      %1917 = vmatprep.subr.bf16.mxu0 0
      %1918 = vmatpush1.bf16.msra.mxu0 0
      %1919 = vmatprep.subr.bf16.mxu0 0
      %1920 = vmatpush1.bf16.msra.mxu0 0
      %1921 = vmatprep.subr.bf16.mxu0 0
      %1922 = vmatpush1.bf16.msra.mxu0 0
      %1923 = vmatprep.subr.bf16.mxu0 0
      %1924 = vmatpush1.bf16.msra.mxu0 %v1868
      %1925 = vmatprep.subr.bf16.mxu0 0
      %1926 = vmatpush1.bf16.msra.mxu0 %v1853
      %1927 = vmatprep.subr.bf16.mxu0 0
      %1928 = vmatpush2.bf16.msra.mxu0 0
      %1929 = vmatprep.subr.bf16.mxu0 0
      %1930 = vmatpush2.bf16.msra.mxu0 0
      %1931 = vmatprep.subr.bf16.mxu0 0
      %1932 = vmatpush2.bf16.msra.mxu0 0
      %1933 = vmatprep.subr.bf16.mxu0 0
      %1934 = vmatpush2.bf16.msra.mxu0 0
      %1935 = vmatprep.subr.bf16.mxu0 0
      %1936 = vmatpush2.bf16.msra.mxu0 0
      %1937 = vmatprep.subr.bf16.mxu0 0
      %1938 = vmatpush2.bf16.msra.mxu0 0
      %1939 = vmatprep.subr.bf16.mxu0 0
      %1940 = vmatpush2.bf16.msra.mxu0 0
      %1941 = vmatprep.subr.bf16.mxu0 0
      %1942 = vmatpush2.bf16.msra.mxu0 0
      %1943 = vmatprep.mubr.bf16.mxu0 0
      %1944 = vmatmul.mubr.bf16.gmra.mxu0 %v1859
      %v1945 = vpop.f32.mrf.mxu0
      %v1946 = vadd.f32 0.0, %v1945
      %v1947 = vpop.f32.mrf.mxu0
      %v1948 = vpop.f32.mrf.mxu0
      %v1949 = vpop.f32.mrf.mxu0
      %1950 = vdwg.mxu0
      %v1951 = vmax.f32 %v1905, 0.0
      %v1952 = vmax.f32 %v1907, 0.0
      %v1953 = vmax.f32 %v1946, 0.0
      %1954 = vst [vmem:[%s170] sm:$0xff] %v1951
      %1955 = vst [vmem:[%s170 + $0x8] sm:$0xff] %v1952
      %vm1956 = vcmask 785408
      %1957 = vst.msk [vmem:[%s170 + $0x10] sm:$0xff] %vm1956, %v1953
      %p1958 = scmp.lt.s32.totalorder %s14, 1
      %s1959 = scalar_select %p1958, %s14, 1
      %s1960 = smul.addr %s1959, 3
      %s1961 = smul.addr %s1960, 8
      %s1962 = scalar_lea.vmem %s3, %s1961
      // Predicated region
      $region33: #{multi_scale_conv.1} parent=31 // pred_check
        %p1963 = pneg %p100
      $region34: #{multi_scale_conv.1} parent=31 // pred_check_branch
        %1965 = sbr.rel (%p1963) target = $region36
      $region35: #{multi_scale_conv.1} parent=31 // pred_region
        _
      $region36: #{multi_scale_conv.1} parent=31 // pred_fallthru
        _
    $region32: #{multi_scale_conv.1} parent=5 // pred_fallthru
      _
    %p1966 = scmp.le.s32.totalorder 2, %s9
    // Predicated region
    $region37: #{multi_scale_conv.1} parent=5 // pred_check
      %p1967 = pneg %p1966
    $region38: #{multi_scale_conv.1} parent=5 // pred_check_branch
      %1969 = sbr.rel (%p1967) target = $region40
    $region39: #{multi_scale_conv.1} parent=5 // pred_region
      %s1970 = ssub.s32 %s9, 2
      // Predicated region
      $region41: #{multi_scale_conv.1} parent=39 // pred_check
        %p1971 = pneg %p106
      $region42: #{multi_scale_conv.1} parent=39 // pred_check_branch
        %1973 = sbr.rel (%p1971) target = $region44
      $region43: #{multi_scale_conv.1} parent=39 // pred_region
        %p1974 = scmp.lt.s32.totalorder %s15, 1
        %s1975 = scalar_select %p1974, %s15, 1
        %s1976 = smul.addr %s1975, 3
        %s1977 = smul.addr %s1976, 8
        %s1978 = scalar_lea.vmem %s3, %s1977
      $region44: #{multi_scale_conv.1} parent=39 // pred_fallthru
        _
    $region40: #{multi_scale_conv.1} parent=5 // pred_fallthru
      _
  $region6: #{multi_scale_conv.1} parent=0 // loop_footer
    %s13 = sadd.s32 1, %s9
  $region7: #{multi_scale_conv.1} parent=0 // loop_footer_branch
    %8 = sbr.rel target = $region3
  $region8: #{multi_scale_conv.1} parent=0 // loop_exit
    _

</llo_original>
